<compile_context>
chip_gen: v7x
topology: tpu7x:2x2x1
jax: 0.10.0
libtpu: 0.0.40
codegen_flags: <defaults>
</compile_context>

<pallas_src>
import math

import jax
import jax.numpy as jnp
from jax.experimental import pallas as pl
from jax.experimental.pallas import tpu as pltpu

# ----------------------------- model config -----------------------------
VOCAB = 100
MAX_POS = 16
HIDDEN = 32
N_HEADS = 2
HEAD_DIM = HIDDEN // N_HEADS
INTERMEDIATE = 64
N_LAYERS = 2
NUM_LABELS = 3
LN_EPS = 1e-12


# ----------------------------- in-kernel helpers -----------------------------
def _mm(a, b):
    """MXU matmul: bf16 operands, f32 accumulation."""
    return jnp.dot(a.astype(jnp.bfloat16), b.astype(jnp.bfloat16),
                   preferred_element_type=jnp.float32)


def _layernorm(x, g, b):
    mu = jnp.mean(x, axis=-1, keepdims=True)
    d = x - mu
    var = jnp.mean(d * d, axis=-1, keepdims=True)
    return d * jax.lax.rsqrt(var + LN_EPS) * g + b


def _gelu_tanh(x):
    # TODO(synk): HuggingFace BERT default is exact erf-GELU; tanh approximation
    # is used for guaranteed Mosaic lowering of the transcendental.
    c = math.sqrt(2.0 / math.pi)
    return 0.5 * x * (1.0 + jnp.tanh(c * (x + 0.044715 * x * x * x)))


# ----------------------------- fused kernel -----------------------------
def _bert_fused_kernel(emb_ref, mask_ref,
                       emb_g_ref, emb_b_ref,
                       qkv_w_ref, qkv_b_ref, o_w_ref, o_b_ref,
                       ln1_g_ref, ln1_b_ref,
                       ff1_w_ref, ff1_b_ref, ff2_w_ref, ff2_b_ref,
                       ln2_g_ref, ln2_b_ref,
                       pool_w_ref, pool_b_ref, cls_w_ref, cls_b_ref,
                       out_ref):
    """One grid step == one batch element.  Everything is VMEM-resident."""
    x = emb_ref[0]                    # (S, H) fp32 activations
    m = mask_ref[0]                   # (1, S) additive attention mask

    # embedding layernorm
    x = _layernorm(x, emb_g_ref[...], emb_b_ref[...])

    scale = 1.0 / math.sqrt(HEAD_DIM)
    for li in range(N_LAYERS):        # static unroll; weights stay resident
        # ---- fused QKV projection: one (S,H) x (H,3H) MXU pass ----
        qkv = _mm(x, qkv_w_ref[li]) + qkv_b_ref[li]                       # (S, 3H)

        # ---- multi-head attention; head split done in-kernel ----
        ctx_heads = []
        for h in range(N_HEADS):
            q_h = qkv[:, h * HEAD_DIM:(h + 1) * HEAD_DIM]                 # (S, D)
            k_h = qkv[:, HIDDEN + h * HEAD_DIM:HIDDEN + (h + 1) * HEAD_DIM]
            v_h = qkv[:, 2 * HIDDEN + h * HEAD_DIM:2 * HIDDEN + (h + 1) * HEAD_DIM]
            s = jax.lax.dot_general(
                q_h.astype(jnp.bfloat16), k_h.astype(jnp.bfloat16),
                (((1,), (1,)), ((), ())),
                preferred_element_type=jnp.float32) * scale + m          # (S, S)
            s = s - jnp.max(s, axis=-1, keepdims=True)
            p = jnp.exp(s)
            p = p * pl.reciprocal(jnp.sum(p, axis=-1, keepdims=True), approx=True)
            ctx_heads.append(_mm(p, v_h))                                 # (S, D)
        ctx = jnp.concatenate(ctx_heads, axis=-1)                         # (S, H)

        # ---- output projection with fused residual + layernorm epilogue ----
        attn_out = _mm(ctx, o_w_ref[li]) + o_b_ref[li]
        x = _layernorm(x + attn_out, ln1_g_ref[li], ln1_b_ref[li])

        # ---- feed-forward with fused residual + layernorm epilogue ----
        ff = _gelu_tanh(_mm(x, ff1_w_ref[li]) + ff1_b_ref[li])
        ff = _mm(ff, ff2_w_ref[li]) + ff2_b_ref[li]
        x = _layernorm(x + ff, ln2_g_ref[li], ln2_b_ref[li])

    # ---- pooler (CLS token) + classifier head ----
    cls_tok = x[0:1, :]                                                   # (1, H)
    pooled = jnp.tanh(_mm(cls_tok, pool_w_ref[...]) + pool_b_ref[...])
    logits = _mm(pooled, cls_w_ref[...]) + cls_b_ref[...]                 # (1, NUM_LABELS)
    out_ref[0] = logits


# ----------------------------- parameter init -----------------------------
def init_params(key):
    std = 0.02
    keys = jax.random.split(key, 9)

    def dense(k, shape):
        return jax.random.normal(k, shape, jnp.float32) * std

    L = N_LAYERS
    return {
        "word_emb": dense(keys[0], (VOCAB, HIDDEN)),
        "pos_emb": dense(keys[1], (MAX_POS, HIDDEN)),
        "type_emb": dense(keys[2], (2, HIDDEN)),
        "emb_ln_g": jnp.ones((1, HIDDEN), jnp.float32),
        "emb_ln_b": jnp.zeros((1, HIDDEN), jnp.float32),
        # per-layer weights stacked along a leading layer axis, QKV fused
        "qkv_w": dense(keys[3], (L, HIDDEN, 3 * HIDDEN)),
        "qkv_b": jnp.zeros((L, 1, 3 * HIDDEN), jnp.float32),
        "o_w": dense(keys[4], (L, HIDDEN, HIDDEN)),
        "o_b": jnp.zeros((L, 1, HIDDEN), jnp.float32),
        "ln1_g": jnp.ones((L, 1, HIDDEN), jnp.float32),
        "ln1_b": jnp.zeros((L, 1, HIDDEN), jnp.float32),
        "ff1_w": dense(keys[5], (L, HIDDEN, INTERMEDIATE)),
        "ff1_b": jnp.zeros((L, 1, INTERMEDIATE), jnp.float32),
        "ff2_w": dense(keys[6], (L, INTERMEDIATE, HIDDEN)),
        "ff2_b": jnp.zeros((L, 1, HIDDEN), jnp.float32),
        "ln2_g": jnp.ones((L, 1, HIDDEN), jnp.float32),
        "ln2_b": jnp.zeros((L, 1, HIDDEN), jnp.float32),
        "pooler_w": dense(keys[7], (HIDDEN, HIDDEN)),
        "pooler_b": jnp.zeros((1, HIDDEN), jnp.float32),
        "cls_w": dense(keys[8], (HIDDEN, NUM_LABELS)),
        "cls_b": jnp.zeros((1, NUM_LABELS), jnp.float32),
    }


_WEIGHT_ORDER = ("emb_ln_g", "emb_ln_b", "qkv_w", "qkv_b", "o_w", "o_b",
                 "ln1_g", "ln1_b", "ff1_w", "ff1_b", "ff2_w", "ff2_b",
                 "ln2_g", "ln2_b", "pooler_w", "pooler_b", "cls_w", "cls_b")


# ----------------------------- forward pass -----------------------------
def bert_wrapper_forward(params, input_ids, attention_mask=None):
    """Equivalent of BertModelWrapper.forward: returns classification logits."""
    B, S = input_ids.shape
    if attention_mask is None:
        attention_mask = jnp.ones((B, S), jnp.float32)
    attention_mask = attention_mask.astype(jnp.float32)

    # Embedding-table gather stays in XLA (glue); token_type hard-coded to 0.
    emb = (params["word_emb"][input_ids]
           + params["pos_emb"][:S][None, :, :]
           + params["type_emb"][0][None, None, :])                       # (B, S, H)

    # HuggingFace-style additive mask, built once: (B, 1, S)
    add_mask = ((1.0 - attention_mask) * -10000.0).reshape(B, 1, S)

    weights = [params[k] for k in _WEIGHT_ORDER]

    def batch_spec(shape):
        nd = len(shape)
        return pl.BlockSpec((1,) + tuple(shape[1:]),
                            lambda b: (b,) + (0,) * (nd - 1))

    def const_spec(shape):
        nd = len(shape)
        return pl.BlockSpec(tuple(shape), lambda b: (0,) * nd)

    in_specs = ([batch_spec(emb.shape), batch_spec(add_mask.shape)]
                + [const_spec(w.shape) for w in weights])

    out = pl.pallas_call(
        _bert_fused_kernel,
        out_shape=jax.ShapeDtypeStruct((B, 1, NUM_LABELS), jnp.float32),
        grid=(B,),
        in_specs=in_specs,
        out_specs=pl.BlockSpec((1, 1, NUM_LABELS), lambda b: (b, 0, 0)),
        compiler_params=pltpu.CompilerParams(
            dimension_semantics=("parallel",)),       # megacore split over batch
    )(emb, add_mask, *weights)

    return out.reshape(B, NUM_LABELS)


# ----------------------------- main -----------------------------
if __name__ == "__main__":
    key = jax.random.PRNGKey(0)
    k_param, k_ids = jax.random.split(key)

    B, S = 2, 8
    params = init_params(k_param)
    input_ids = jax.random.randint(k_ids, (B, S), 0, VOCAB, dtype=jnp.int32)
    attention_mask = jnp.array(
        [[1, 1, 1, 1, 1, 1, 1, 1],
         [1, 1, 1, 1, 1, 1, 0, 0]], dtype=jnp.int32)

    forward = jax.jit(bert_wrapper_forward)
    logits = forward(params, input_ids, attention_mask)
    logits = jax.block_until_ready(logits)

    assert logits.shape == (B, NUM_LABELS)
    assert bool(jnp.all(jnp.isfinite(logits)))
    print("KERNEL_OK")
</pallas_src>

<mosaic_0001>
module attributes {stable_mosaic.version = 11 : i64} {
  func.func @_bert_fused_kernel(%arg0: i32, %arg1: memref<1x8x32xf32, #tpu.memory_space<vmem>>, %arg2: memref<1x1x8xf32, #tpu.memory_space<vmem>>, %arg3: memref<1x32xf32, #tpu.memory_space<vmem>>, %arg4: memref<1x32xf32, #tpu.memory_space<vmem>>, %arg5: memref<2x32x96xf32, #tpu.memory_space<vmem>>, %arg6: memref<2x1x96xf32, #tpu.memory_space<vmem>>, %arg7: memref<2x32x32xf32, #tpu.memory_space<vmem>>, %arg8: memref<2x1x32xf32, #tpu.memory_space<vmem>>, %arg9: memref<2x1x32xf32, #tpu.memory_space<vmem>>, %arg10: memref<2x1x32xf32, #tpu.memory_space<vmem>>, %arg11: memref<2x32x64xf32, #tpu.memory_space<vmem>>, %arg12: memref<2x1x64xf32, #tpu.memory_space<vmem>>, %arg13: memref<2x64x32xf32, #tpu.memory_space<vmem>>, %arg14: memref<2x1x32xf32, #tpu.memory_space<vmem>>, %arg15: memref<2x1x32xf32, #tpu.memory_space<vmem>>, %arg16: memref<2x1x32xf32, #tpu.memory_space<vmem>>, %arg17: memref<32x32xf32, #tpu.memory_space<vmem>>, %arg18: memref<1x32xf32, #tpu.memory_space<vmem>>, %arg19: memref<32x3xf32, #tpu.memory_space<vmem>>, %arg20: memref<1x3xf32, #tpu.memory_space<vmem>>, %arg21: memref<1x1x3xf32, #tpu.memory_space<vmem>>) attributes {dimension_semantics = [#tpu.dimension_semantics<parallel>], iteration_bounds = array<i64: 2>, scalar_prefetch = 0 : i64, scratch_operands = 0 : i64, tpu.core_type = #tpu.core_type<tc>, window_params = [{transform_indices = @transform_0, window_bounds = array<i64: 1, 8, 32>}, {transform_indices = @transform_1, window_bounds = array<i64: 1, 1, 8>}, {pipeline_mode = #tpu.pipeline_mode<synchronous>, transform_indices = @transform_2, window_bounds = array<i64: 1, 32>}, {pipeline_mode = #tpu.pipeline_mode<synchronous>, transform_indices = @transform_3, window_bounds = array<i64: 1, 32>}, {pipeline_mode = #tpu.pipeline_mode<synchronous>, transform_indices = @transform_4, window_bounds = array<i64: 2, 32, 96>}, {pipeline_mode = #tpu.pipeline_mode<synchronous>, transform_indices = @transform_5, window_bounds = array<i64: 2, 1, 96>}, {pipeline_mode = #tpu.pipeline_mode<synchronous>, transform_indices = @transform_6, window_bounds = array<i64: 2, 32, 32>}, {pipeline_mode = #tpu.pipeline_mode<synchronous>, transform_indices = @transform_7, window_bounds = array<i64: 2, 1, 32>}, {pipeline_mode = #tpu.pipeline_mode<synchronous>, transform_indices = @transform_8, window_bounds = array<i64: 2, 1, 32>}, {pipeline_mode = #tpu.pipeline_mode<synchronous>, transform_indices = @transform_9, window_bounds = array<i64: 2, 1, 32>}, {pipeline_mode = #tpu.pipeline_mode<synchronous>, transform_indices = @transform_10, window_bounds = array<i64: 2, 32, 64>}, {pipeline_mode = #tpu.pipeline_mode<synchronous>, transform_indices = @transform_11, window_bounds = array<i64: 2, 1, 64>}, {pipeline_mode = #tpu.pipeline_mode<synchronous>, transform_indices = @transform_12, window_bounds = array<i64: 2, 64, 32>}, {pipeline_mode = #tpu.pipeline_mode<synchronous>, transform_indices = @transform_13, window_bounds = array<i64: 2, 1, 32>}, {pipeline_mode = #tpu.pipeline_mode<synchronous>, transform_indices = @transform_14, window_bounds = array<i64: 2, 1, 32>}, {pipeline_mode = #tpu.pipeline_mode<synchronous>, transform_indices = @transform_15, window_bounds = array<i64: 2, 1, 32>}, {pipeline_mode = #tpu.pipeline_mode<synchronous>, transform_indices = @transform_16, window_bounds = array<i64: 32, 32>}, {pipeline_mode = #tpu.pipeline_mode<synchronous>, transform_indices = @transform_17, window_bounds = array<i64: 1, 32>}, {pipeline_mode = #tpu.pipeline_mode<synchronous>, transform_indices = @transform_18, window_bounds = array<i64: 32, 3>}, {pipeline_mode = #tpu.pipeline_mode<synchronous>, transform_indices = @transform_19, window_bounds = array<i64: 1, 3>}, {transform_indices = @transform_20, window_bounds = array<i64: 1, 1, 3>}]} {
    %c0 = arith.constant 0 : index
    %c0_0 = arith.constant 0 : index
    %c0_1 = arith.constant 0 : index
    %0 = vector.load %arg1[%c0, %c0_0, %c0_1] : memref<1x8x32xf32, #tpu.memory_space<vmem>>, vector<1x8x32xf32>
    %1 = vector.shape_cast %0 : vector<1x8x32xf32> to vector<8x32xf32>
    %c0_2 = arith.constant 0 : index
    %c0_3 = arith.constant 0 : index
    %c0_4 = arith.constant 0 : index
    %2 = vector.load %arg2[%c0_2, %c0_3, %c0_4] : memref<1x1x8xf32, #tpu.memory_space<vmem>>, vector<1x1x8xf32>
    %3 = vector.shape_cast %2 : vector<1x1x8xf32> to vector<1x8xf32>
    %c0_5 = arith.constant 0 : index
    %c0_6 = arith.constant 0 : index
    %4 = vector.load %arg3[%c0_5, %c0_6] : memref<1x32xf32, #tpu.memory_space<vmem>>, vector<1x32xf32>
    %c0_7 = arith.constant 0 : index
    %c0_8 = arith.constant 0 : index
    %5 = vector.load %arg4[%c0_7, %c0_8] : memref<1x32xf32, #tpu.memory_space<vmem>>, vector<1x32xf32>
    %cst = arith.constant dense<0.000000e+00> : vector<8xf32>
    %6 = vector.multi_reduction <add>, %1, %cst [1] : vector<8x32xf32> to vector<8xf32>
    %7 = vector.shape_cast %6 : vector<8xf32> to vector<8x1xf32>
    %cst_9 = arith.constant 3.200000e+01 : f32
    %8 = vector.broadcast %cst_9 : f32 to vector<8x1xf32>
    %9 = arith.divf %7, %8 : vector<8x1xf32>
    %10 = vector.broadcast %9 : vector<8x1xf32> to vector<8x32xf32>
    %11 = arith.subf %1, %10 : vector<8x32xf32>
    %12 = arith.mulf %11, %11 : vector<8x32xf32>
    %cst_10 = arith.constant dense<0.000000e+00> : vector<8xf32>
    %13 = vector.multi_reduction <add>, %12, %cst_10 [1] : vector<8x32xf32> to vector<8xf32>
    %14 = vector.shape_cast %13 : vector<8xf32> to vector<8x1xf32>
    %cst_11 = arith.constant 3.200000e+01 : f32
    %15 = vector.broadcast %cst_11 : f32 to vector<8x1xf32>
    %16 = arith.divf %14, %15 : vector<8x1xf32>
    %cst_12 = arith.constant 9.99999996E-13 : f32
    %17 = vector.broadcast %cst_12 : f32 to vector<8x1xf32>
    %18 = arith.addf %16, %17 : vector<8x1xf32>
    %19 = math.rsqrt %18 : vector<8x1xf32>
    %20 = vector.broadcast %19 : vector<8x1xf32> to vector<8x32xf32>
    %21 = arith.mulf %11, %20 : vector<8x32xf32>
    %22 = vector.broadcast %4 : vector<1x32xf32> to vector<8x32xf32>
    %23 = arith.mulf %21, %22 : vector<8x32xf32>
    %24 = vector.broadcast %5 : vector<1x32xf32> to vector<8x32xf32>
    %25 = arith.addf %23, %24 : vector<8x32xf32>
    %c0_13 = arith.constant 0 : index
    %c0_14 = arith.constant 0 : index
    %c0_15 = arith.constant 0 : index
    %26 = vector.load %arg5[%c0_13, %c0_14, %c0_15] : memref<2x32x96xf32, #tpu.memory_space<vmem>>, vector<1x32x96xf32>
    %27 = vector.shape_cast %26 : vector<1x32x96xf32> to vector<32x96xf32>
    %28 = arith.truncf %25 : vector<8x32xf32> to vector<8x32xbf16>
    %29 = arith.truncf %27 : vector<32x96xf32> to vector<32x96xbf16>
    %cst_16 = arith.constant dense<0.000000e+00> : vector<8x96xf32>
    %30 = tpu.matmul %28, %29, %cst_16 {dimension_numbers = #tpu.dot_dimension_numbers<[1], [0], [0], [1], [0, 0, 1, 1], [], []>} : vector<8x32xbf16>, vector<32x96xbf16>, vector<8x96xf32> -> vector<8x96xf32>
    %c0_17 = arith.constant 0 : index
    %c0_18 = arith.constant 0 : index
    %c0_19 = arith.constant 0 : index
    %31 = vector.load %arg6[%c0_17, %c0_18, %c0_19] : memref<2x1x96xf32, #tpu.memory_space<vmem>>, vector<1x1x96xf32>
    %32 = vector.shape_cast %31 : vector<1x1x96xf32> to vector<1x96xf32>
    %33 = vector.broadcast %32 : vector<1x96xf32> to vector<8x96xf32>
    %34 = arith.addf %30, %33 : vector<8x96xf32>
    %35 = vector.extract_strided_slice %34 {offsets = [0, 0], sizes = [8, 16], strides = [1, 1]} : vector<8x96xf32> to vector<8x16xf32>
    %36 = vector.extract_strided_slice %34 {offsets = [0, 32], sizes = [8, 16], strides = [1, 1]} : vector<8x96xf32> to vector<8x16xf32>
    %37 = vector.extract_strided_slice %34 {offsets = [0, 64], sizes = [8, 16], strides = [1, 1]} : vector<8x96xf32> to vector<8x16xf32>
    %38 = arith.truncf %35 : vector<8x16xf32> to vector<8x16xbf16>
    %39 = arith.truncf %36 : vector<8x16xf32> to vector<8x16xbf16>
    %cst_20 = arith.constant dense<0.000000e+00> : vector<8x8xf32>
    %40 = tpu.matmul %38, %39, %cst_20 {dimension_numbers = #tpu.dot_dimension_numbers<[1], [1], [0], [0], [0, 0, 1, 0], [], []>} : vector<8x16xbf16>, vector<8x16xbf16>, vector<8x8xf32> -> vector<8x8xf32>
    %cst_21 = arith.constant 2.500000e-01 : f32
    %41 = vector.broadcast %cst_21 : f32 to vector<8x8xf32>
    %42 = arith.mulf %40, %41 : vector<8x8xf32>
    %43 = vector.broadcast %3 : vector<1x8xf32> to vector<8x8xf32>
    %44 = arith.addf %42, %43 : vector<8x8xf32>
    %cst_22 = arith.constant dense<0xFF800000> : vector<8xf32>
    %45 = vector.multi_reduction <maximumf>, %44, %cst_22 [1] : vector<8x8xf32> to vector<8xf32>
    %46 = vector.shape_cast %45 : vector<8xf32> to vector<8x1xf32>
    %47 = vector.broadcast %46 : vector<8x1xf32> to vector<8x8xf32>
    %48 = arith.subf %44, %47 : vector<8x8xf32>
    %49 = math.exp %48 : vector<8x8xf32>
    %cst_23 = arith.constant dense<0.000000e+00> : vector<8xf32>
    %50 = vector.multi_reduction <add>, %49, %cst_23 [1] : vector<8x8xf32> to vector<8xf32>
    %51 = vector.shape_cast %50 : vector<8xf32> to vector<8x1xf32>
    %52 = tpu.reciprocal %51 {approx = true} : vector<8x1xf32> -> vector<8x1xf32>
    %53 = vector.broadcast %52 : vector<8x1xf32> to vector<8x8xf32>
    %54 = arith.mulf %49, %53 : vector<8x8xf32>
    %55 = arith.truncf %54 : vector<8x8xf32> to vector<8x8xbf16>
    %56 = arith.truncf %37 : vector<8x16xf32> to vector<8x16xbf16>
    %cst_24 = arith.constant dense<0.000000e+00> : vector<8x16xf32>
    %57 = tpu.matmul %55, %56, %cst_24 {dimension_numbers = #tpu.dot_dimension_numbers<[1], [0], [0], [1], [0, 0, 1, 1], [], []>} : vector<8x8xbf16>, vector<8x16xbf16>, vector<8x16xf32> -> vector<8x16xf32>
    %58 = vector.extract_strided_slice %34 {offsets = [0, 16], sizes = [8, 16], strides = [1, 1]} : vector<8x96xf32> to vector<8x16xf32>
    %59 = vector.extract_strided_slice %34 {offsets = [0, 48], sizes = [8, 16], strides = [1, 1]} : vector<8x96xf32> to vector<8x16xf32>
    %60 = vector.extract_strided_slice %34 {offsets = [0, 80], sizes = [8, 16], strides = [1, 1]} : vector<8x96xf32> to vector<8x16xf32>
    %61 = arith.truncf %58 : vector<8x16xf32> to vector<8x16xbf16>
    %62 = arith.truncf %59 : vector<8x16xf32> to vector<8x16xbf16>
    %cst_25 = arith.constant dense<0.000000e+00> : vector<8x8xf32>
    %63 = tpu.matmul %61, %62, %cst_25 {dimension_numbers = #tpu.dot_dimension_numbers<[1], [1], [0], [0], [0, 0, 1, 0], [], []>} : vector<8x16xbf16>, vector<8x16xbf16>, vector<8x8xf32> -> vector<8x8xf32>
    %cst_26 = arith.constant 2.500000e-01 : f32
    %64 = vector.broadcast %cst_26 : f32 to vector<8x8xf32>
    %65 = arith.mulf %63, %64 : vector<8x8xf32>
    %66 = vector.broadcast %3 : vector<1x8xf32> to vector<8x8xf32>
    %67 = arith.addf %65, %66 : vector<8x8xf32>
    %cst_27 = arith.constant dense<0xFF800000> : vector<8xf32>
    %68 = vector.multi_reduction <maximumf>, %67, %cst_27 [1] : vector<8x8xf32> to vector<8xf32>
    %69 = vector.shape_cast %68 : vector<8xf32> to vector<8x1xf32>
    %70 = vector.broadcast %69 : vector<8x1xf32> to vector<8x8xf32>
    %71 = arith.subf %67, %70 : vector<8x8xf32>
    %72 = math.exp %71 : vector<8x8xf32>
    %cst_28 = arith.constant dense<0.000000e+00> : vector<8xf32>
    %73 = vector.multi_reduction <add>, %72, %cst_28 [1] : vector<8x8xf32> to vector<8xf32>
    %74 = vector.shape_cast %73 : vector<8xf32> to vector<8x1xf32>
    %75 = tpu.reciprocal %74 {approx = true} : vector<8x1xf32> -> vector<8x1xf32>
    %76 = vector.broadcast %75 : vector<8x1xf32> to vector<8x8xf32>
    %77 = arith.mulf %72, %76 : vector<8x8xf32>
    %78 = arith.truncf %77 : vector<8x8xf32> to vector<8x8xbf16>
    %79 = arith.truncf %60 : vector<8x16xf32> to vector<8x16xbf16>
    %cst_29 = arith.constant dense<0.000000e+00> : vector<8x16xf32>
    %80 = tpu.matmul %78, %79, %cst_29 {dimension_numbers = #tpu.dot_dimension_numbers<[1], [0], [0], [1], [0, 0, 1, 1], [], []>} : vector<8x8xbf16>, vector<8x16xbf16>, vector<8x16xf32> -> vector<8x16xf32>
    %81 = tpu.concatenate %57, %80 in 1 : vector<8x16xf32>, vector<8x16xf32> -> vector<8x32xf32>
    %c0_30 = arith.constant 0 : index
    %c0_31 = arith.constant 0 : index
    %c0_32 = arith.constant 0 : index
    %82 = vector.load %arg7[%c0_30, %c0_31, %c0_32] : memref<2x32x32xf32, #tpu.memory_space<vmem>>, vector<1x32x32xf32>
    %83 = vector.shape_cast %82 : vector<1x32x32xf32> to vector<32x32xf32>
    %84 = arith.truncf %81 : vector<8x32xf32> to vector<8x32xbf16>
    %85 = arith.truncf %83 : vector<32x32xf32> to vector<32x32xbf16>
    %cst_33 = arith.constant dense<0.000000e+00> : vector<8x32xf32>
    %86 = tpu.matmul %84, %85, %cst_33 {dimension_numbers = #tpu.dot_dimension_numbers<[1], [0], [0], [1], [0, 0, 1, 1], [], []>} : vector<8x32xbf16>, vector<32x32xbf16>, vector<8x32xf32> -> vector<8x32xf32>
    %c0_34 = arith.constant 0 : index
    %c0_35 = arith.constant 0 : index
    %c0_36 = arith.constant 0 : index
    %87 = vector.load %arg8[%c0_34, %c0_35, %c0_36] : memref<2x1x32xf32, #tpu.memory_space<vmem>>, vector<1x1x32xf32>
    %88 = vector.shape_cast %87 : vector<1x1x32xf32> to vector<1x32xf32>
    %89 = vector.broadcast %88 : vector<1x32xf32> to vector<8x32xf32>
    %90 = arith.addf %86, %89 : vector<8x32xf32>
    %91 = arith.addf %25, %90 : vector<8x32xf32>
    %c0_37 = arith.constant 0 : index
    %c0_38 = arith.constant 0 : index
    %c0_39 = arith.constant 0 : index
    %92 = vector.load %arg9[%c0_37, %c0_38, %c0_39] : memref<2x1x32xf32, #tpu.memory_space<vmem>>, vector<1x1x32xf32>
    %93 = vector.shape_cast %92 : vector<1x1x32xf32> to vector<1x32xf32>
    %c0_40 = arith.constant 0 : index
    %c0_41 = arith.constant 0 : index
    %c0_42 = arith.constant 0 : index
    %94 = vector.load %arg10[%c0_40, %c0_41, %c0_42] : memref<2x1x32xf32, #tpu.memory_space<vmem>>, vector<1x1x32xf32>
    %95 = vector.shape_cast %94 : vector<1x1x32xf32> to vector<1x32xf32>
    %cst_43 = arith.constant dense<0.000000e+00> : vector<8xf32>
    %96 = vector.multi_reduction <add>, %91, %cst_43 [1] : vector<8x32xf32> to vector<8xf32>
    %97 = vector.shape_cast %96 : vector<8xf32> to vector<8x1xf32>
    %cst_44 = arith.constant 3.200000e+01 : f32
    %98 = vector.broadcast %cst_44 : f32 to vector<8x1xf32>
    %99 = arith.divf %97, %98 : vector<8x1xf32>
    %100 = vector.broadcast %99 : vector<8x1xf32> to vector<8x32xf32>
    %101 = arith.subf %91, %100 : vector<8x32xf32>
    %102 = arith.mulf %101, %101 : vector<8x32xf32>
    %cst_45 = arith.constant dense<0.000000e+00> : vector<8xf32>
    %103 = vector.multi_reduction <add>, %102, %cst_45 [1] : vector<8x32xf32> to vector<8xf32>
    %104 = vector.shape_cast %103 : vector<8xf32> to vector<8x1xf32>
    %cst_46 = arith.constant 3.200000e+01 : f32
    %105 = vector.broadcast %cst_46 : f32 to vector<8x1xf32>
    %106 = arith.divf %104, %105 : vector<8x1xf32>
    %cst_47 = arith.constant 9.99999996E-13 : f32
    %107 = vector.broadcast %cst_47 : f32 to vector<8x1xf32>
    %108 = arith.addf %106, %107 : vector<8x1xf32>
    %109 = math.rsqrt %108 : vector<8x1xf32>
    %110 = vector.broadcast %109 : vector<8x1xf32> to vector<8x32xf32>
    %111 = arith.mulf %101, %110 : vector<8x32xf32>
    %112 = vector.broadcast %93 : vector<1x32xf32> to vector<8x32xf32>
    %113 = arith.mulf %111, %112 : vector<8x32xf32>
    %114 = vector.broadcast %95 : vector<1x32xf32> to vector<8x32xf32>
    %115 = arith.addf %113, %114 : vector<8x32xf32>
    %c0_48 = arith.constant 0 : index
    %c0_49 = arith.constant 0 : index
    %c0_50 = arith.constant 0 : index
    %116 = vector.load %arg11[%c0_48, %c0_49, %c0_50] : memref<2x32x64xf32, #tpu.memory_space<vmem>>, vector<1x32x64xf32>
    %117 = vector.shape_cast %116 : vector<1x32x64xf32> to vector<32x64xf32>
    %118 = arith.truncf %115 : vector<8x32xf32> to vector<8x32xbf16>
    %119 = arith.truncf %117 : vector<32x64xf32> to vector<32x64xbf16>
    %cst_51 = arith.constant dense<0.000000e+00> : vector<8x64xf32>
    %120 = tpu.matmul %118, %119, %cst_51 {dimension_numbers = #tpu.dot_dimension_numbers<[1], [0], [0], [1], [0, 0, 1, 1], [], []>} : vector<8x32xbf16>, vector<32x64xbf16>, vector<8x64xf32> -> vector<8x64xf32>
    %c0_52 = arith.constant 0 : index
    %c0_53 = arith.constant 0 : index
    %c0_54 = arith.constant 0 : index
    %121 = vector.load %arg12[%c0_52, %c0_53, %c0_54] : memref<2x1x64xf32, #tpu.memory_space<vmem>>, vector<1x1x64xf32>
    %122 = vector.shape_cast %121 : vector<1x1x64xf32> to vector<1x64xf32>
    %123 = vector.broadcast %122 : vector<1x64xf32> to vector<8x64xf32>
    %124 = arith.addf %120, %123 : vector<8x64xf32>
    %cst_55 = arith.constant 5.000000e-01 : f32
    %125 = vector.broadcast %cst_55 : f32 to vector<8x64xf32>
    %126 = arith.mulf %125, %124 : vector<8x64xf32>
    %cst_56 = arith.constant 4.471500e-02 : f32
    %127 = vector.broadcast %cst_56 : f32 to vector<8x64xf32>
    %128 = arith.mulf %127, %124 : vector<8x64xf32>
    %129 = arith.mulf %128, %124 : vector<8x64xf32>
    %130 = arith.mulf %129, %124 : vector<8x64xf32>
    %131 = arith.addf %124, %130 : vector<8x64xf32>
    %cst_57 = arith.constant 0.797884583 : f32
    %132 = vector.broadcast %cst_57 : f32 to vector<8x64xf32>
    %133 = arith.mulf %132, %131 : vector<8x64xf32>
    %134 = math.tanh %133 : vector<8x64xf32>
    %cst_58 = arith.constant 1.000000e+00 : f32
    %135 = vector.broadcast %cst_58 : f32 to vector<8x64xf32>
    %136 = arith.addf %135, %134 : vector<8x64xf32>
    %137 = arith.mulf %126, %136 : vector<8x64xf32>
    %c0_59 = arith.constant 0 : index
    %c0_60 = arith.constant 0 : index
    %c0_61 = arith.constant 0 : index
    %138 = vector.load %arg13[%c0_59, %c0_60, %c0_61] : memref<2x64x32xf32, #tpu.memory_space<vmem>>, vector<1x64x32xf32>
    %139 = vector.shape_cast %138 : vector<1x64x32xf32> to vector<64x32xf32>
    %140 = arith.truncf %137 : vector<8x64xf32> to vector<8x64xbf16>
    %141 = arith.truncf %139 : vector<64x32xf32> to vector<64x32xbf16>
    %cst_62 = arith.constant dense<0.000000e+00> : vector<8x32xf32>
    %142 = tpu.matmul %140, %141, %cst_62 {dimension_numbers = #tpu.dot_dimension_numbers<[1], [0], [0], [1], [0, 0, 1, 1], [], []>} : vector<8x64xbf16>, vector<64x32xbf16>, vector<8x32xf32> -> vector<8x32xf32>
    %c0_63 = arith.constant 0 : index
    %c0_64 = arith.constant 0 : index
    %c0_65 = arith.constant 0 : index
    %143 = vector.load %arg14[%c0_63, %c0_64, %c0_65] : memref<2x1x32xf32, #tpu.memory_space<vmem>>, vector<1x1x32xf32>
    %144 = vector.shape_cast %143 : vector<1x1x32xf32> to vector<1x32xf32>
    %145 = vector.broadcast %144 : vector<1x32xf32> to vector<8x32xf32>
    %146 = arith.addf %142, %145 : vector<8x32xf32>
    %147 = arith.addf %115, %146 : vector<8x32xf32>
    %c0_66 = arith.constant 0 : index
    %c0_67 = arith.constant 0 : index
    %c0_68 = arith.constant 0 : index
    %148 = vector.load %arg15[%c0_66, %c0_67, %c0_68] : memref<2x1x32xf32, #tpu.memory_space<vmem>>, vector<1x1x32xf32>
    %149 = vector.shape_cast %148 : vector<1x1x32xf32> to vector<1x32xf32>
    %c0_69 = arith.constant 0 : index
    %c0_70 = arith.constant 0 : index
    %c0_71 = arith.constant 0 : index
    %150 = vector.load %arg16[%c0_69, %c0_70, %c0_71] : memref<2x1x32xf32, #tpu.memory_space<vmem>>, vector<1x1x32xf32>
    %151 = vector.shape_cast %150 : vector<1x1x32xf32> to vector<1x32xf32>
    %cst_72 = arith.constant dense<0.000000e+00> : vector<8xf32>
    %152 = vector.multi_reduction <add>, %147, %cst_72 [1] : vector<8x32xf32> to vector<8xf32>
    %153 = vector.shape_cast %152 : vector<8xf32> to vector<8x1xf32>
    %cst_73 = arith.constant 3.200000e+01 : f32
    %154 = vector.broadcast %cst_73 : f32 to vector<8x1xf32>
    %155 = arith.divf %153, %154 : vector<8x1xf32>
    %156 = vector.broadcast %155 : vector<8x1xf32> to vector<8x32xf32>
    %157 = arith.subf %147, %156 : vector<8x32xf32>
    %158 = arith.mulf %157, %157 : vector<8x32xf32>
    %cst_74 = arith.constant dense<0.000000e+00> : vector<8xf32>
    %159 = vector.multi_reduction <add>, %158, %cst_74 [1] : vector<8x32xf32> to vector<8xf32>
    %160 = vector.shape_cast %159 : vector<8xf32> to vector<8x1xf32>
    %cst_75 = arith.constant 3.200000e+01 : f32
    %161 = vector.broadcast %cst_75 : f32 to vector<8x1xf32>
    %162 = arith.divf %160, %161 : vector<8x1xf32>
    %cst_76 = arith.constant 9.99999996E-13 : f32
    %163 = vector.broadcast %cst_76 : f32 to vector<8x1xf32>
    %164 = arith.addf %162, %163 : vector<8x1xf32>
    %165 = math.rsqrt %164 : vector<8x1xf32>
    %166 = vector.broadcast %165 : vector<8x1xf32> to vector<8x32xf32>
    %167 = arith.mulf %157, %166 : vector<8x32xf32>
    %168 = vector.broadcast %149 : vector<1x32xf32> to vector<8x32xf32>
    %169 = arith.mulf %167, %168 : vector<8x32xf32>
    %170 = vector.broadcast %151 : vector<1x32xf32> to vector<8x32xf32>
    %171 = arith.addf %169, %170 : vector<8x32xf32>
    %c1 = arith.constant 1 : index
    %c0_77 = arith.constant 0 : index
    %c0_78 = arith.constant 0 : index
    %172 = vector.load %arg5[%c1, %c0_77, %c0_78] : memref<2x32x96xf32, #tpu.memory_space<vmem>>, vector<1x32x96xf32>
    %173 = vector.shape_cast %172 : vector<1x32x96xf32> to vector<32x96xf32>
    %174 = arith.truncf %171 : vector<8x32xf32> to vector<8x32xbf16>
    %175 = arith.truncf %173 : vector<32x96xf32> to vector<32x96xbf16>
    %cst_79 = arith.constant dense<0.000000e+00> : vector<8x96xf32>
    %176 = tpu.matmul %174, %175, %cst_79 {dimension_numbers = #tpu.dot_dimension_numbers<[1], [0], [0], [1], [0, 0, 1, 1], [], []>} : vector<8x32xbf16>, vector<32x96xbf16>, vector<8x96xf32> -> vector<8x96xf32>
    %c1_80 = arith.constant 1 : index
    %c0_81 = arith.constant 0 : index
    %c0_82 = arith.constant 0 : index
    %177 = vector.load %arg6[%c1_80, %c0_81, %c0_82] : memref<2x1x96xf32, #tpu.memory_space<vmem>>, vector<1x1x96xf32>
    %178 = vector.shape_cast %177 : vector<1x1x96xf32> to vector<1x96xf32>
    %179 = vector.broadcast %178 : vector<1x96xf32> to vector<8x96xf32>
    %180 = arith.addf %176, %179 : vector<8x96xf32>
    %181 = vector.extract_strided_slice %180 {offsets = [0, 0], sizes = [8, 16], strides = [1, 1]} : vector<8x96xf32> to vector<8x16xf32>
    %182 = vector.extract_strided_slice %180 {offsets = [0, 32], sizes = [8, 16], strides = [1, 1]} : vector<8x96xf32> to vector<8x16xf32>
    %183 = vector.extract_strided_slice %180 {offsets = [0, 64], sizes = [8, 16], strides = [1, 1]} : vector<8x96xf32> to vector<8x16xf32>
    %184 = arith.truncf %181 : vector<8x16xf32> to vector<8x16xbf16>
    %185 = arith.truncf %182 : vector<8x16xf32> to vector<8x16xbf16>
    %cst_83 = arith.constant dense<0.000000e+00> : vector<8x8xf32>
    %186 = tpu.matmul %184, %185, %cst_83 {dimension_numbers = #tpu.dot_dimension_numbers<[1], [1], [0], [0], [0, 0, 1, 0], [], []>} : vector<8x16xbf16>, vector<8x16xbf16>, vector<8x8xf32> -> vector<8x8xf32>
    %cst_84 = arith.constant 2.500000e-01 : f32
    %187 = vector.broadcast %cst_84 : f32 to vector<8x8xf32>
    %188 = arith.mulf %186, %187 : vector<8x8xf32>
    %189 = vector.broadcast %3 : vector<1x8xf32> to vector<8x8xf32>
    %190 = arith.addf %188, %189 : vector<8x8xf32>
    %cst_85 = arith.constant dense<0xFF800000> : vector<8xf32>
    %191 = vector.multi_reduction <maximumf>, %190, %cst_85 [1] : vector<8x8xf32> to vector<8xf32>
    %192 = vector.shape_cast %191 : vector<8xf32> to vector<8x1xf32>
    %193 = vector.broadcast %192 : vector<8x1xf32> to vector<8x8xf32>
    %194 = arith.subf %190, %193 : vector<8x8xf32>
    %195 = math.exp %194 : vector<8x8xf32>
    %cst_86 = arith.constant dense<0.000000e+00> : vector<8xf32>
    %196 = vector.multi_reduction <add>, %195, %cst_86 [1] : vector<8x8xf32> to vector<8xf32>
    %197 = vector.shape_cast %196 : vector<8xf32> to vector<8x1xf32>
    %198 = tpu.reciprocal %197 {approx = true} : vector<8x1xf32> -> vector<8x1xf32>
    %199 = vector.broadcast %198 : vector<8x1xf32> to vector<8x8xf32>
    %200 = arith.mulf %195, %199 : vector<8x8xf32>
    %201 = arith.truncf %200 : vector<8x8xf32> to vector<8x8xbf16>
    %202 = arith.truncf %183 : vector<8x16xf32> to vector<8x16xbf16>
    %cst_87 = arith.constant dense<0.000000e+00> : vector<8x16xf32>
    %203 = tpu.matmul %201, %202, %cst_87 {dimension_numbers = #tpu.dot_dimension_numbers<[1], [0], [0], [1], [0, 0, 1, 1], [], []>} : vector<8x8xbf16>, vector<8x16xbf16>, vector<8x16xf32> -> vector<8x16xf32>
    %204 = vector.extract_strided_slice %180 {offsets = [0, 16], sizes = [8, 16], strides = [1, 1]} : vector<8x96xf32> to vector<8x16xf32>
    %205 = vector.extract_strided_slice %180 {offsets = [0, 48], sizes = [8, 16], strides = [1, 1]} : vector<8x96xf32> to vector<8x16xf32>
    %206 = vector.extract_strided_slice %180 {offsets = [0, 80], sizes = [8, 16], strides = [1, 1]} : vector<8x96xf32> to vector<8x16xf32>
    %207 = arith.truncf %204 : vector<8x16xf32> to vector<8x16xbf16>
    %208 = arith.truncf %205 : vector<8x16xf32> to vector<8x16xbf16>
    %cst_88 = arith.constant dense<0.000000e+00> : vector<8x8xf32>
    %209 = tpu.matmul %207, %208, %cst_88 {dimension_numbers = #tpu.dot_dimension_numbers<[1], [1], [0], [0], [0, 0, 1, 0], [], []>} : vector<8x16xbf16>, vector<8x16xbf16>, vector<8x8xf32> -> vector<8x8xf32>
    %cst_89 = arith.constant 2.500000e-01 : f32
    %210 = vector.broadcast %cst_89 : f32 to vector<8x8xf32>
    %211 = arith.mulf %209, %210 : vector<8x8xf32>
    %212 = vector.broadcast %3 : vector<1x8xf32> to vector<8x8xf32>
    %213 = arith.addf %211, %212 : vector<8x8xf32>
    %cst_90 = arith.constant dense<0xFF800000> : vector<8xf32>
    %214 = vector.multi_reduction <maximumf>, %213, %cst_90 [1] : vector<8x8xf32> to vector<8xf32>
    %215 = vector.shape_cast %214 : vector<8xf32> to vector<8x1xf32>
    %216 = vector.broadcast %215 : vector<8x1xf32> to vector<8x8xf32>
    %217 = arith.subf %213, %216 : vector<8x8xf32>
    %218 = math.exp %217 : vector<8x8xf32>
    %cst_91 = arith.constant dense<0.000000e+00> : vector<8xf32>
    %219 = vector.multi_reduction <add>, %218, %cst_91 [1] : vector<8x8xf32> to vector<8xf32>
    %220 = vector.shape_cast %219 : vector<8xf32> to vector<8x1xf32>
    %221 = tpu.reciprocal %220 {approx = true} : vector<8x1xf32> -> vector<8x1xf32>
    %222 = vector.broadcast %221 : vector<8x1xf32> to vector<8x8xf32>
    %223 = arith.mulf %218, %222 : vector<8x8xf32>
    %224 = arith.truncf %223 : vector<8x8xf32> to vector<8x8xbf16>
    %225 = arith.truncf %206 : vector<8x16xf32> to vector<8x16xbf16>
    %cst_92 = arith.constant dense<0.000000e+00> : vector<8x16xf32>
    %226 = tpu.matmul %224, %225, %cst_92 {dimension_numbers = #tpu.dot_dimension_numbers<[1], [0], [0], [1], [0, 0, 1, 1], [], []>} : vector<8x8xbf16>, vector<8x16xbf16>, vector<8x16xf32> -> vector<8x16xf32>
    %227 = tpu.concatenate %203, %226 in 1 : vector<8x16xf32>, vector<8x16xf32> -> vector<8x32xf32>
    %c1_93 = arith.constant 1 : index
    %c0_94 = arith.constant 0 : index
    %c0_95 = arith.constant 0 : index
    %228 = vector.load %arg7[%c1_93, %c0_94, %c0_95] : memref<2x32x32xf32, #tpu.memory_space<vmem>>, vector<1x32x32xf32>
    %229 = vector.shape_cast %228 : vector<1x32x32xf32> to vector<32x32xf32>
    %230 = arith.truncf %227 : vector<8x32xf32> to vector<8x32xbf16>
    %231 = arith.truncf %229 : vector<32x32xf32> to vector<32x32xbf16>
    %cst_96 = arith.constant dense<0.000000e+00> : vector<8x32xf32>
    %232 = tpu.matmul %230, %231, %cst_96 {dimension_numbers = #tpu.dot_dimension_numbers<[1], [0], [0], [1], [0, 0, 1, 1], [], []>} : vector<8x32xbf16>, vector<32x32xbf16>, vector<8x32xf32> -> vector<8x32xf32>
    %c1_97 = arith.constant 1 : index
    %c0_98 = arith.constant 0 : index
    %c0_99 = arith.constant 0 : index
    %233 = vector.load %arg8[%c1_97, %c0_98, %c0_99] : memref<2x1x32xf32, #tpu.memory_space<vmem>>, vector<1x1x32xf32>
    %234 = vector.shape_cast %233 : vector<1x1x32xf32> to vector<1x32xf32>
    %235 = vector.broadcast %234 : vector<1x32xf32> to vector<8x32xf32>
    %236 = arith.addf %232, %235 : vector<8x32xf32>
    %237 = arith.addf %171, %236 : vector<8x32xf32>
    %c1_100 = arith.constant 1 : index
    %c0_101 = arith.constant 0 : index
    %c0_102 = arith.constant 0 : index
    %238 = vector.load %arg9[%c1_100, %c0_101, %c0_102] : memref<2x1x32xf32, #tpu.memory_space<vmem>>, vector<1x1x32xf32>
    %239 = vector.shape_cast %238 : vector<1x1x32xf32> to vector<1x32xf32>
    %c1_103 = arith.constant 1 : index
    %c0_104 = arith.constant 0 : index
    %c0_105 = arith.constant 0 : index
    %240 = vector.load %arg10[%c1_103, %c0_104, %c0_105] : memref<2x1x32xf32, #tpu.memory_space<vmem>>, vector<1x1x32xf32>
    %241 = vector.shape_cast %240 : vector<1x1x32xf32> to vector<1x32xf32>
    %cst_106 = arith.constant dense<0.000000e+00> : vector<8xf32>
    %242 = vector.multi_reduction <add>, %237, %cst_106 [1] : vector<8x32xf32> to vector<8xf32>
    %243 = vector.shape_cast %242 : vector<8xf32> to vector<8x1xf32>
    %cst_107 = arith.constant 3.200000e+01 : f32
    %244 = vector.broadcast %cst_107 : f32 to vector<8x1xf32>
    %245 = arith.divf %243, %244 : vector<8x1xf32>
    %246 = vector.broadcast %245 : vector<8x1xf32> to vector<8x32xf32>
    %247 = arith.subf %237, %246 : vector<8x32xf32>
    %248 = arith.mulf %247, %247 : vector<8x32xf32>
    %cst_108 = arith.constant dense<0.000000e+00> : vector<8xf32>
    %249 = vector.multi_reduction <add>, %248, %cst_108 [1] : vector<8x32xf32> to vector<8xf32>
    %250 = vector.shape_cast %249 : vector<8xf32> to vector<8x1xf32>
    %cst_109 = arith.constant 3.200000e+01 : f32
    %251 = vector.broadcast %cst_109 : f32 to vector<8x1xf32>
    %252 = arith.divf %250, %251 : vector<8x1xf32>
    %cst_110 = arith.constant 9.99999996E-13 : f32
    %253 = vector.broadcast %cst_110 : f32 to vector<8x1xf32>
    %254 = arith.addf %252, %253 : vector<8x1xf32>
    %255 = math.rsqrt %254 : vector<8x1xf32>
    %256 = vector.broadcast %255 : vector<8x1xf32> to vector<8x32xf32>
    %257 = arith.mulf %247, %256 : vector<8x32xf32>
    %258 = vector.broadcast %239 : vector<1x32xf32> to vector<8x32xf32>
    %259 = arith.mulf %257, %258 : vector<8x32xf32>
    %260 = vector.broadcast %241 : vector<1x32xf32> to vector<8x32xf32>
    %261 = arith.addf %259, %260 : vector<8x32xf32>
    %c1_111 = arith.constant 1 : index
    %c0_112 = arith.constant 0 : index
    %c0_113 = arith.constant 0 : index
    %262 = vector.load %arg11[%c1_111, %c0_112, %c0_113] : memref<2x32x64xf32, #tpu.memory_space<vmem>>, vector<1x32x64xf32>
    %263 = vector.shape_cast %262 : vector<1x32x64xf32> to vector<32x64xf32>
    %264 = arith.truncf %261 : vector<8x32xf32> to vector<8x32xbf16>
    %265 = arith.truncf %263 : vector<32x64xf32> to vector<32x64xbf16>
    %cst_114 = arith.constant dense<0.000000e+00> : vector<8x64xf32>
    %266 = tpu.matmul %264, %265, %cst_114 {dimension_numbers = #tpu.dot_dimension_numbers<[1], [0], [0], [1], [0, 0, 1, 1], [], []>} : vector<8x32xbf16>, vector<32x64xbf16>, vector<8x64xf32> -> vector<8x64xf32>
    %c1_115 = arith.constant 1 : index
    %c0_116 = arith.constant 0 : index
    %c0_117 = arith.constant 0 : index
    %267 = vector.load %arg12[%c1_115, %c0_116, %c0_117] : memref<2x1x64xf32, #tpu.memory_space<vmem>>, vector<1x1x64xf32>
    %268 = vector.shape_cast %267 : vector<1x1x64xf32> to vector<1x64xf32>
    %269 = vector.broadcast %268 : vector<1x64xf32> to vector<8x64xf32>
    %270 = arith.addf %266, %269 : vector<8x64xf32>
    %cst_118 = arith.constant 5.000000e-01 : f32
    %271 = vector.broadcast %cst_118 : f32 to vector<8x64xf32>
    %272 = arith.mulf %271, %270 : vector<8x64xf32>
    %cst_119 = arith.constant 4.471500e-02 : f32
    %273 = vector.broadcast %cst_119 : f32 to vector<8x64xf32>
    %274 = arith.mulf %273, %270 : vector<8x64xf32>
    %275 = arith.mulf %274, %270 : vector<8x64xf32>
    %276 = arith.mulf %275, %270 : vector<8x64xf32>
    %277 = arith.addf %270, %276 : vector<8x64xf32>
    %cst_120 = arith.constant 0.797884583 : f32
    %278 = vector.broadcast %cst_120 : f32 to vector<8x64xf32>
    %279 = arith.mulf %278, %277 : vector<8x64xf32>
    %280 = math.tanh %279 : vector<8x64xf32>
    %cst_121 = arith.constant 1.000000e+00 : f32
    %281 = vector.broadcast %cst_121 : f32 to vector<8x64xf32>
    %282 = arith.addf %281, %280 : vector<8x64xf32>
    %283 = arith.mulf %272, %282 : vector<8x64xf32>
    %c1_122 = arith.constant 1 : index
    %c0_123 = arith.constant 0 : index
    %c0_124 = arith.constant 0 : index
    %284 = vector.load %arg13[%c1_122, %c0_123, %c0_124] : memref<2x64x32xf32, #tpu.memory_space<vmem>>, vector<1x64x32xf32>
    %285 = vector.shape_cast %284 : vector<1x64x32xf32> to vector<64x32xf32>
    %286 = arith.truncf %283 : vector<8x64xf32> to vector<8x64xbf16>
    %287 = arith.truncf %285 : vector<64x32xf32> to vector<64x32xbf16>
    %cst_125 = arith.constant dense<0.000000e+00> : vector<8x32xf32>
    %288 = tpu.matmul %286, %287, %cst_125 {dimension_numbers = #tpu.dot_dimension_numbers<[1], [0], [0], [1], [0, 0, 1, 1], [], []>} : vector<8x64xbf16>, vector<64x32xbf16>, vector<8x32xf32> -> vector<8x32xf32>
    %c1_126 = arith.constant 1 : index
    %c0_127 = arith.constant 0 : index
    %c0_128 = arith.constant 0 : index
    %289 = vector.load %arg14[%c1_126, %c0_127, %c0_128] : memref<2x1x32xf32, #tpu.memory_space<vmem>>, vector<1x1x32xf32>
    %290 = vector.shape_cast %289 : vector<1x1x32xf32> to vector<1x32xf32>
    %291 = vector.broadcast %290 : vector<1x32xf32> to vector<8x32xf32>
    %292 = arith.addf %288, %291 : vector<8x32xf32>
    %293 = arith.addf %261, %292 : vector<8x32xf32>
    %c1_129 = arith.constant 1 : index
    %c0_130 = arith.constant 0 : index
    %c0_131 = arith.constant 0 : index
    %294 = vector.load %arg15[%c1_129, %c0_130, %c0_131] : memref<2x1x32xf32, #tpu.memory_space<vmem>>, vector<1x1x32xf32>
    %295 = vector.shape_cast %294 : vector<1x1x32xf32> to vector<1x32xf32>
    %c1_132 = arith.constant 1 : index
    %c0_133 = arith.constant 0 : index
    %c0_134 = arith.constant 0 : index
    %296 = vector.load %arg16[%c1_132, %c0_133, %c0_134] : memref<2x1x32xf32, #tpu.memory_space<vmem>>, vector<1x1x32xf32>
    %297 = vector.shape_cast %296 : vector<1x1x32xf32> to vector<1x32xf32>
    %cst_135 = arith.constant dense<0.000000e+00> : vector<8xf32>
    %298 = vector.multi_reduction <add>, %293, %cst_135 [1] : vector<8x32xf32> to vector<8xf32>
    %299 = vector.shape_cast %298 : vector<8xf32> to vector<8x1xf32>
    %cst_136 = arith.constant 3.200000e+01 : f32
    %300 = vector.broadcast %cst_136 : f32 to vector<8x1xf32>
    %301 = arith.divf %299, %300 : vector<8x1xf32>
    %302 = vector.broadcast %301 : vector<8x1xf32> to vector<8x32xf32>
    %303 = arith.subf %293, %302 : vector<8x32xf32>
    %304 = arith.mulf %303, %303 : vector<8x32xf32>
    %cst_137 = arith.constant dense<0.000000e+00> : vector<8xf32>
    %305 = vector.multi_reduction <add>, %304, %cst_137 [1] : vector<8x32xf32> to vector<8xf32>
    %306 = vector.shape_cast %305 : vector<8xf32> to vector<8x1xf32>
    %cst_138 = arith.constant 3.200000e+01 : f32
    %307 = vector.broadcast %cst_138 : f32 to vector<8x1xf32>
    %308 = arith.divf %306, %307 : vector<8x1xf32>
    %cst_139 = arith.constant 9.99999996E-13 : f32
    %309 = vector.broadcast %cst_139 : f32 to vector<8x1xf32>
    %310 = arith.addf %308, %309 : vector<8x1xf32>
    %311 = math.rsqrt %310 : vector<8x1xf32>
    %312 = vector.broadcast %311 : vector<8x1xf32> to vector<8x32xf32>
    %313 = arith.mulf %303, %312 : vector<8x32xf32>
    %314 = vector.broadcast %295 : vector<1x32xf32> to vector<8x32xf32>
    %315 = arith.mulf %313, %314 : vector<8x32xf32>
    %316 = vector.broadcast %297 : vector<1x32xf32> to vector<8x32xf32>
    %317 = arith.addf %315, %316 : vector<8x32xf32>
    %318 = vector.extract_strided_slice %317 {offsets = [0, 0], sizes = [1, 32], strides = [1, 1]} : vector<8x32xf32> to vector<1x32xf32>
    %c0_140 = arith.constant 0 : index
    %c0_141 = arith.constant 0 : index
    %319 = vector.load %arg17[%c0_140, %c0_141] : memref<32x32xf32, #tpu.memory_space<vmem>>, vector<32x32xf32>
    %320 = arith.truncf %318 : vector<1x32xf32> to vector<1x32xbf16>
    %321 = arith.truncf %319 : vector<32x32xf32> to vector<32x32xbf16>
    %cst_142 = arith.constant dense<0.000000e+00> : vector<1x32xf32>
    %322 = tpu.matmul %320, %321, %cst_142 {dimension_numbers = #tpu.dot_dimension_numbers<[1], [0], [0], [1], [0, 0, 1, 1], [], []>} : vector<1x32xbf16>, vector<32x32xbf16>, vector<1x32xf32> -> vector<1x32xf32>
    %c0_143 = arith.constant 0 : index
    %c0_144 = arith.constant 0 : index
    %323 = vector.load %arg18[%c0_143, %c0_144] : memref<1x32xf32, #tpu.memory_space<vmem>>, vector<1x32xf32>
    %324 = arith.addf %322, %323 : vector<1x32xf32>
    %325 = math.tanh %324 : vector<1x32xf32>
    %c0_145 = arith.constant 0 : index
    %c0_146 = arith.constant 0 : index
    %326 = vector.load %arg19[%c0_145, %c0_146] : memref<32x3xf32, #tpu.memory_space<vmem>>, vector<32x3xf32>
    %327 = arith.truncf %325 : vector<1x32xf32> to vector<1x32xbf16>
    %328 = arith.truncf %326 : vector<32x3xf32> to vector<32x3xbf16>
    %cst_147 = arith.constant dense<0.000000e+00> : vector<1x3xf32>
    %329 = tpu.matmul %327, %328, %cst_147 {dimension_numbers = #tpu.dot_dimension_numbers<[1], [0], [0], [1], [0, 0, 1, 1], [], []>} : vector<1x32xbf16>, vector<32x3xbf16>, vector<1x3xf32> -> vector<1x3xf32>
    %c0_148 = arith.constant 0 : index
    %c0_149 = arith.constant 0 : index
    %330 = vector.load %arg20[%c0_148, %c0_149] : memref<1x3xf32, #tpu.memory_space<vmem>>, vector<1x3xf32>
    %331 = arith.addf %329, %330 : vector<1x3xf32>
    %c0_150 = arith.constant 0 : index
    %c0_151 = arith.constant 0 : index
    %c0_152 = arith.constant 0 : index
    %332 = vector.load %arg21[%c0_150, %c0_151, %c0_152] : memref<1x1x3xf32, #tpu.memory_space<vmem>>, vector<1x1x3xf32>
    %333 = vector.shape_cast %332 : vector<1x1x3xf32> to vector<1x3xf32>
    %334 = vector.shape_cast %331 : vector<1x3xf32> to vector<1x1x3xf32>
    tpu.vector_store %arg21[%c0_150, %c0_151, %c0_152], %334 {strides = array<i32>} : memref<1x1x3xf32, #tpu.memory_space<vmem>>, vector<1x1x3xf32>,
    return
  }
  func.func @transform_0(%arg0: i32) -> (i32, i32, i32) {
    %c0_i32 = arith.constant 0 : i32
    %c0_i32_0 = arith.constant 0 : i32
    %c0_i32_1 = arith.constant 0 : i32
    return %arg0, %c0_i32, %c0_i32_0 : i32, i32, i32
  }
  func.func @transform_1(%arg0: i32) -> (i32, i32, i32) {
    %c0_i32 = arith.constant 0 : i32
    %c0_i32_0 = arith.constant 0 : i32
    %c0_i32_1 = arith.constant 0 : i32
    return %arg0, %c0_i32, %c0_i32_0 : i32, i32, i32
  }
  func.func @transform_2(%arg0: i32) -> (i32, i32) {
    %c0_i32 = arith.constant 0 : i32
    %c0_i32_0 = arith.constant 0 : i32
    %c0_i32_1 = arith.constant 0 : i32
    return %c0_i32, %c0_i32_0 : i32, i32
  }
  func.func @transform_3(%arg0: i32) -> (i32, i32) {
    %c0_i32 = arith.constant 0 : i32
    %c0_i32_0 = arith.constant 0 : i32
    %c0_i32_1 = arith.constant 0 : i32
    return %c0_i32, %c0_i32_0 : i32, i32
  }
  func.func @transform_4(%arg0: i32) -> (i32, i32, i32) {
    %c0_i32 = arith.constant 0 : i32
    %c0_i32_0 = arith.constant 0 : i32
    %c0_i32_1 = arith.constant 0 : i32
    %c0_i32_2 = arith.constant 0 : i32
    return %c0_i32, %c0_i32_0, %c0_i32_1 : i32, i32, i32
  }
  func.func @transform_5(%arg0: i32) -> (i32, i32, i32) {
    %c0_i32 = arith.constant 0 : i32
    %c0_i32_0 = arith.constant 0 : i32
    %c0_i32_1 = arith.constant 0 : i32
    %c0_i32_2 = arith.constant 0 : i32
    return %c0_i32, %c0_i32_0, %c0_i32_1 : i32, i32, i32
  }
  func.func @transform_6(%arg0: i32) -> (i32, i32, i32) {
    %c0_i32 = arith.constant 0 : i32
    %c0_i32_0 = arith.constant 0 : i32
    %c0_i32_1 = arith.constant 0 : i32
    %c0_i32_2 = arith.constant 0 : i32
    return %c0_i32, %c0_i32_0, %c0_i32_1 : i32, i32, i32
  }
  func.func @transform_7(%arg0: i32) -> (i32, i32, i32) {
    %c0_i32 = arith.constant 0 : i32
    %c0_i32_0 = arith.constant 0 : i32
    %c0_i32_1 = arith.constant 0 : i32
    %c0_i32_2 = arith.constant 0 : i32
    return %c0_i32, %c0_i32_0, %c0_i32_1 : i32, i32, i32
  }
  func.func @transform_8(%arg0: i32) -> (i32, i32, i32) {
    %c0_i32 = arith.constant 0 : i32
    %c0_i32_0 = arith.constant 0 : i32
    %c0_i32_1 = arith.constant 0 : i32
    %c0_i32_2 = arith.constant 0 : i32
    return %c0_i32, %c0_i32_0, %c0_i32_1 : i32, i32, i32
  }
  func.func @transform_9(%arg0: i32) -> (i32, i32, i32) {
    %c0_i32 = arith.constant 0 : i32
    %c0_i32_0 = arith.constant 0 : i32
    %c0_i32_1 = arith.constant 0 : i32
    %c0_i32_2 = arith.constant 0 : i32
    return %c0_i32, %c0_i32_0, %c0_i32_1 : i32, i32, i32
  }
  func.func @transform_10(%arg0: i32) -> (i32, i32, i32) {
    %c0_i32 = arith.constant 0 : i32
    %c0_i32_0 = arith.constant 0 : i32
    %c0_i32_1 = arith.constant 0 : i32
    %c0_i32_2 = arith.constant 0 : i32
    return %c0_i32, %c0_i32_0, %c0_i32_1 : i32, i32, i32
  }
  func.func @transform_11(%arg0: i32) -> (i32, i32, i32) {
    %c0_i32 = arith.constant 0 : i32
    %c0_i32_0 = arith.constant 0 : i32
    %c0_i32_1 = arith.constant 0 : i32
    %c0_i32_2 = arith.constant 0 : i32
    return %c0_i32, %c0_i32_0, %c0_i32_1 : i32, i32, i32
  }
  func.func @transform_12(%arg0: i32) -> (i32, i32, i32) {
    %c0_i32 = arith.constant 0 : i32
    %c0_i32_0 = arith.constant 0 : i32
    %c0_i32_1 = arith.constant 0 : i32
    %c0_i32_2 = arith.constant 0 : i32
    return %c0_i32, %c0_i32_0, %c0_i32_1 : i32, i32, i32
  }
  func.func @transform_13(%arg0: i32) -> (i32, i32, i32) {
    %c0_i32 = arith.constant 0 : i32
    %c0_i32_0 = arith.constant 0 : i32
    %c0_i32_1 = arith.constant 0 : i32
    %c0_i32_2 = arith.constant 0 : i32
    return %c0_i32, %c0_i32_0, %c0_i32_1 : i32, i32, i32
  }
  func.func @transform_14(%arg0: i32) -> (i32, i32, i32) {
    %c0_i32 = arith.constant 0 : i32
    %c0_i32_0 = arith.constant 0 : i32
    %c0_i32_1 = arith.constant 0 : i32
    %c0_i32_2 = arith.constant 0 : i32
    return %c0_i32, %c0_i32_0, %c0_i32_1 : i32, i32, i32
  }
  func.func @transform_15(%arg0: i32) -> (i32, i32, i32) {
    %c0_i32 = arith.constant 0 : i32
    %c0_i32_0 = arith.constant 0 : i32
    %c0_i32_1 = arith.constant 0 : i32
    %c0_i32_2 = arith.constant 0 : i32
    return %c0_i32, %c0_i32_0, %c0_i32_1 : i32, i32, i32
  }
  func.func @transform_16(%arg0: i32) -> (i32, i32) {
    %c0_i32 = arith.constant 0 : i32
    %c0_i32_0 = arith.constant 0 : i32
    %c0_i32_1 = arith.constant 0 : i32
    return %c0_i32, %c0_i32_0 : i32, i32
  }
  func.func @transform_17(%arg0: i32) -> (i32, i32) {
    %c0_i32 = arith.constant 0 : i32
    %c0_i32_0 = arith.constant 0 : i32
    %c0_i32_1 = arith.constant 0 : i32
    return %c0_i32, %c0_i32_0 : i32, i32
  }
  func.func @transform_18(%arg0: i32) -> (i32, i32) {
    %c0_i32 = arith.constant 0 : i32
    %c0_i32_0 = arith.constant 0 : i32
    %c0_i32_1 = arith.constant 0 : i32
    return %c0_i32, %c0_i32_0 : i32, i32
  }
  func.func @transform_19(%arg0: i32) -> (i32, i32) {
    %c0_i32 = arith.constant 0 : i32
    %c0_i32_0 = arith.constant 0 : i32
    %c0_i32_1 = arith.constant 0 : i32
    return %c0_i32, %c0_i32_0 : i32, i32
  }
  func.func @transform_20(%arg0: i32) -> (i32, i32, i32) {
    %c0_i32 = arith.constant 0 : i32
    %c0_i32_0 = arith.constant 0 : i32
    %c0_i32_1 = arith.constant 0 : i32
    return %arg0, %c0_i32, %c0_i32_0 : i32, i32, i32
  }
}

</mosaic_0001>

<llo_original>
// kernel: bert_wrapper_forward.1
$region0: #{bert_wrapper_forward.1}
  #allocation0 [shape = 'u32[]', space=smem, size = 0x4, offset = 0x4, fixed_abs, tag = 'smem constant byte address 0x4 - core index']
  #allocation1 [shape = 'u32[144,128]{1,0:T(1,128)}', space=vmem, size = 0x12000, scoped, tag = 'internal scratch']
  %s0 = inlined_call_operand.vmem [shape: f32[2,8,32], index: 0, kind: input, shape index: {}]
  %s1 = inlined_call_operand.vmem [shape: f32[2,1,8], index: 1, kind: input, shape index: {}]
  %s2 = inlined_call_operand.vmem [shape: f32[1,32], index: 2, kind: input, shape index: {}]
  %s3 = inlined_call_operand.vmem [shape: f32[1,32], index: 3, kind: input, shape index: {}]
  %s4 = inlined_call_operand.vmem [shape: f32[2,32,96], index: 4, kind: input, shape index: {}]
  %s5 = inlined_call_operand.vmem [shape: f32[2,1,96], index: 5, kind: input, shape index: {}]
  %s6 = inlined_call_operand.vmem [shape: f32[2,32,32], index: 6, kind: input, shape index: {}]
  %s7 = inlined_call_operand.vmem [shape: f32[2,1,32], index: 7, kind: input, shape index: {}]
  %s8 = inlined_call_operand.vmem [shape: f32[2,1,32], index: 8, kind: input, shape index: {}]
  %s9 = inlined_call_operand.vmem [shape: f32[2,1,32], index: 9, kind: input, shape index: {}]
  %s10 = inlined_call_operand.vmem [shape: f32[2,32,64], index: 10, kind: input, shape index: {}]
  %s11 = inlined_call_operand.vmem [shape: f32[2,1,64], index: 11, kind: input, shape index: {}]
  %s12 = inlined_call_operand.vmem [shape: f32[2,64,32], index: 12, kind: input, shape index: {}]
  %s13 = inlined_call_operand.vmem [shape: f32[2,1,32], index: 13, kind: input, shape index: {}]
  %s14 = inlined_call_operand.vmem [shape: f32[2,1,32], index: 14, kind: input, shape index: {}]
  %s15 = inlined_call_operand.vmem [shape: f32[2,1,32], index: 15, kind: input, shape index: {}]
  %s16 = inlined_call_operand.vmem [shape: f32[32,32], index: 16, kind: input, shape index: {}]
  %s17 = inlined_call_operand.vmem [shape: f32[1,32], index: 17, kind: input, shape index: {}]
  %s18 = inlined_call_operand.vmem [shape: f32[32,3], index: 18, kind: input, shape index: {}]
  %s19 = inlined_call_operand.vmem [shape: f32[1,3], index: 19, kind: input, shape index: {}]
  %s20 = inlined_call_operand.hbm [shape: f32[2,1,3], index: 20, kind: output, shape index: {}]
  %s21 = sld [smem:[#allocation0]]
  $region113: #{bert_wrapper_forward.1} parent=0
    _
  %s23 = ssub.s32 1, %s21
  %s24 = scalar_select 0, %s23, %s21
  $region1: #{bert_wrapper_forward.1} parent=0
    #allocation2 [shape = 'u8[1024]{0}', space=vmem, size = 0x400, scoped, tag = 'output window, operand 0']
    #allocation3 [shape = 's32[2]{0}', space=sflag, size = 0x8, scoped, tag = 'scoped memory for bert_wrapper_forward.1']
    %25 = vsyncpa [#allocation3], 0
    %s26 = scalar_lea.sflag [#allocation3], 1
    %27 = vsyncpa %s26, 0
    loop: start=0, step=1, limit=4
    $region2: #{bert_wrapper_forward.1} parent=1 // loop_pre_header
      _
    $region3: #{bert_wrapper_forward.1} parent=1 // loop_header
      %s29 = sphi 0, %s33
      %p30 = scmp.ge.s32.totalorder %s29, 4
      %s39 = sphi 0, %s41
      %s42 = sphi 0, %s39
      %s43 = sphi 0, %s42
      %s59 = sphi 0, %s43
      %s65 = sphi 0, %s67
      %s68 = sphi 0, %s65
      %s69 = sphi 0, %s68
      %s85 = sphi 0, %s69
      %s89 = sphi 0, %s89
      %s91 = sphi 0, %s89
      %s92 = sphi 0, %s91
      %s106 = sphi 0, %s92
      %s110 = sphi 0, %s110
      %s112 = sphi 0, %s110
      %s113 = sphi 0, %s112
      %s127 = sphi 0, %s113
      %s131 = sphi 0, %s131
      %s133 = sphi 0, %s131
      %s134 = sphi 0, %s133
      %s148 = sphi 0, %s134
      %s152 = sphi 0, %s152
      %s154 = sphi 0, %s152
      %s155 = sphi 0, %s154
      %s169 = sphi 0, %s155
      %s173 = sphi 0, %s173
      %s175 = sphi 0, %s173
      %s176 = sphi 0, %s175
      %s190 = sphi 0, %s176
      %s194 = sphi 0, %s194
      %s196 = sphi 0, %s194
      %s197 = sphi 0, %s196
      %s211 = sphi 0, %s197
      %s215 = sphi 0, %s215
      %s217 = sphi 0, %s215
      %s218 = sphi 0, %s217
      %s232 = sphi 0, %s218
      %s236 = sphi 0, %s236
      %s238 = sphi 0, %s236
      %s239 = sphi 0, %s238
      %s253 = sphi 0, %s239
      %s257 = sphi 0, %s257
      %s259 = sphi 0, %s257
      %s260 = sphi 0, %s259
      %s274 = sphi 0, %s260
      %s278 = sphi 0, %s278
      %s280 = sphi 0, %s278
      %s281 = sphi 0, %s280
      %s295 = sphi 0, %s281
      %s299 = sphi 0, %s299
      %s301 = sphi 0, %s299
      %s302 = sphi 0, %s301
      %s316 = sphi 0, %s302
      %s320 = sphi 0, %s320
      %s322 = sphi 0, %s320
      %s323 = sphi 0, %s322
      %s337 = sphi 0, %s323
      %s341 = sphi 0, %s341
      %s343 = sphi 0, %s341
      %s344 = sphi 0, %s343
      %s358 = sphi 0, %s344
      %s362 = sphi 0, %s362
      %s364 = sphi 0, %s362
      %s365 = sphi 0, %s364
      %s379 = sphi 0, %s365
      %s383 = sphi 0, %s383
      %s385 = sphi 0, %s383
      %s386 = sphi 0, %s385
      %s400 = sphi 0, %s386
      %s404 = sphi 0, %s404
      %s406 = sphi 0, %s404
      %s407 = sphi 0, %s406
      %s421 = sphi 0, %s407
      %s425 = sphi 0, %s425
      %s427 = sphi 0, %s425
      %s428 = sphi 0, %s427
      %s442 = sphi 0, %s428
      %s446 = sphi 0, %s446
      %s448 = sphi 0, %s446
      %s449 = sphi 0, %s448
      %s463 = sphi 0, %s449
      %s469 = sphi 0, %s471
      %s472 = sphi 0, %s469
      %s473 = sphi 0, %s472
      %s489 = sphi 0, %s473
    $region4: #{bert_wrapper_forward.1} parent=1 // loop_header_branch
      %32 = sbr.rel (%p30) target = $region8
    $region5: #{bert_wrapper_forward.1} parent=1 // loop_body
      %s34 = ssub.s32 %s29, 1
      %s35 = ssub.s32 %s29, 2
      %s36 = sadd.s32 %s29, 1
      %s37 = ssub.s32 %s29, %s36
      %p38 = scmp.eq.s32.totalorder %s37, 0
      %s40 = sadd.s32 %s39, 1
      %s41 = scalar_select %p38, %s39, %s40
      %p44 = pneg %p38
      %p45 = scmp.eq.s32.totalorder %s29, 1
      %p46 = por %p44, %p45
      %p47 = scmp.ne.s32.totalorder %s39, %s42
      %p48 = scmp.eq.s32.totalorder %s29, 0
      %p49 = por %p47, %p48
      %p50 = scmp.ne.s32.totalorder %s39, %s42
      %p51 = scmp.eq.s32.totalorder %s34, 1
      %p52 = por %p50, %p51
      %p53 = scmp.ne.s32.totalorder %s42, %s43
      %p54 = scmp.eq.s32.totalorder %s34, 0
      %p55 = por %p53, %p54
      %p56 = scmp.ne.s32.totalorder %s42, %s43
      %p57 = scmp.eq.s32.totalorder %s35, 1
      %p58 = por %p56, %p57
      %p60 = scmp.ne.s32.totalorder %s43, %s59
      %p61 = scmp.eq.s32.totalorder %s35, 0
      %p62 = por %p60, %p61
      %s63 = ssub.s32 %s29, %s36
      %p64 = scmp.eq.s32.totalorder %s63, 0
      %s66 = sadd.s32 %s65, 1
      %s67 = scalar_select %p64, %s65, %s66
      %p70 = pneg %p64
      %p71 = scmp.eq.s32.totalorder %s29, 1
      %p72 = por %p70, %p71
      %p73 = scmp.ne.s32.totalorder %s65, %s68
      %p74 = scmp.eq.s32.totalorder %s29, 0
      %p75 = por %p73, %p74
      %p76 = scmp.ne.s32.totalorder %s65, %s68
      %p77 = scmp.eq.s32.totalorder %s34, 1
      %p78 = por %p76, %p77
      %p79 = scmp.ne.s32.totalorder %s68, %s69
      %p80 = scmp.eq.s32.totalorder %s34, 0
      %p81 = por %p79, %p80
      %p82 = scmp.ne.s32.totalorder %s68, %s69
      %p83 = scmp.eq.s32.totalorder %s35, 1
      %p84 = por %p82, %p83
      %p86 = scmp.ne.s32.totalorder %s69, %s85
      %p87 = scmp.eq.s32.totalorder %s35, 0
      %p88 = por %p86, %p87
      %s90 = sadd.s32 %s89, 1
      %p93 = scmp.eq.s32.totalorder %s29, 1
      %p94 = scmp.ne.s32.totalorder %s89, %s91
      %p95 = scmp.eq.s32.totalorder %s29, 0
      %p96 = por %p94, %p95
      %p97 = scmp.ne.s32.totalorder %s89, %s91
      %p98 = scmp.eq.s32.totalorder %s34, 1
      %p99 = por %p97, %p98
      %p100 = scmp.ne.s32.totalorder %s91, %s92
      %p101 = scmp.eq.s32.totalorder %s34, 0
      %p102 = por %p100, %p101
      %p103 = scmp.ne.s32.totalorder %s91, %s92
      %p104 = scmp.eq.s32.totalorder %s35, 1
      %p105 = por %p103, %p104
      %p107 = scmp.ne.s32.totalorder %s92, %s106
      %p108 = scmp.eq.s32.totalorder %s35, 0
      %p109 = por %p107, %p108
      %s111 = sadd.s32 %s110, 1
      %p114 = scmp.eq.s32.totalorder %s29, 1
      %p115 = scmp.ne.s32.totalorder %s110, %s112
      %p116 = scmp.eq.s32.totalorder %s29, 0
      %p117 = por %p115, %p116
      %p118 = scmp.ne.s32.totalorder %s110, %s112
      %p119 = scmp.eq.s32.totalorder %s34, 1
      %p120 = por %p118, %p119
      %p121 = scmp.ne.s32.totalorder %s112, %s113
      %p122 = scmp.eq.s32.totalorder %s34, 0
      %p123 = por %p121, %p122
      %p124 = scmp.ne.s32.totalorder %s112, %s113
      %p125 = scmp.eq.s32.totalorder %s35, 1
      %p126 = por %p124, %p125
      %p128 = scmp.ne.s32.totalorder %s113, %s127
      %p129 = scmp.eq.s32.totalorder %s35, 0
      %p130 = por %p128, %p129
      %s132 = sadd.s32 %s131, 1
      %p135 = scmp.eq.s32.totalorder %s29, 1
      %p136 = scmp.ne.s32.totalorder %s131, %s133
      %p137 = scmp.eq.s32.totalorder %s29, 0
      %p138 = por %p136, %p137
      %p139 = scmp.ne.s32.totalorder %s131, %s133
      %p140 = scmp.eq.s32.totalorder %s34, 1
      %p141 = por %p139, %p140
      %p142 = scmp.ne.s32.totalorder %s133, %s134
      %p143 = scmp.eq.s32.totalorder %s34, 0
      %p144 = por %p142, %p143
      %p145 = scmp.ne.s32.totalorder %s133, %s134
      %p146 = scmp.eq.s32.totalorder %s35, 1
      %p147 = por %p145, %p146
      %p149 = scmp.ne.s32.totalorder %s134, %s148
      %p150 = scmp.eq.s32.totalorder %s35, 0
      %p151 = por %p149, %p150
      %s153 = sadd.s32 %s152, 1
      %p156 = scmp.eq.s32.totalorder %s29, 1
      %p157 = scmp.ne.s32.totalorder %s152, %s154
      %p158 = scmp.eq.s32.totalorder %s29, 0
      %p159 = por %p157, %p158
      %p160 = scmp.ne.s32.totalorder %s152, %s154
      %p161 = scmp.eq.s32.totalorder %s34, 1
      %p162 = por %p160, %p161
      %p163 = scmp.ne.s32.totalorder %s154, %s155
      %p164 = scmp.eq.s32.totalorder %s34, 0
      %p165 = por %p163, %p164
      %p166 = scmp.ne.s32.totalorder %s154, %s155
      %p167 = scmp.eq.s32.totalorder %s35, 1
      %p168 = por %p166, %p167
      %p170 = scmp.ne.s32.totalorder %s155, %s169
      %p171 = scmp.eq.s32.totalorder %s35, 0
      %p172 = por %p170, %p171
      %s174 = sadd.s32 %s173, 1
      %p177 = scmp.eq.s32.totalorder %s29, 1
      %p178 = scmp.ne.s32.totalorder %s173, %s175
      %p179 = scmp.eq.s32.totalorder %s29, 0
      %p180 = por %p178, %p179
      %p181 = scmp.ne.s32.totalorder %s173, %s175
      %p182 = scmp.eq.s32.totalorder %s34, 1
      %p183 = por %p181, %p182
      %p184 = scmp.ne.s32.totalorder %s175, %s176
      %p185 = scmp.eq.s32.totalorder %s34, 0
      %p186 = por %p184, %p185
      %p187 = scmp.ne.s32.totalorder %s175, %s176
      %p188 = scmp.eq.s32.totalorder %s35, 1
      %p189 = por %p187, %p188
      %p191 = scmp.ne.s32.totalorder %s176, %s190
      %p192 = scmp.eq.s32.totalorder %s35, 0
      %p193 = por %p191, %p192
      %s195 = sadd.s32 %s194, 1
      %p198 = scmp.eq.s32.totalorder %s29, 1
      %p199 = scmp.ne.s32.totalorder %s194, %s196
      %p200 = scmp.eq.s32.totalorder %s29, 0
      %p201 = por %p199, %p200
      %p202 = scmp.ne.s32.totalorder %s194, %s196
      %p203 = scmp.eq.s32.totalorder %s34, 1
      %p204 = por %p202, %p203
      %p205 = scmp.ne.s32.totalorder %s196, %s197
      %p206 = scmp.eq.s32.totalorder %s34, 0
      %p207 = por %p205, %p206
      %p208 = scmp.ne.s32.totalorder %s196, %s197
      %p209 = scmp.eq.s32.totalorder %s35, 1
      %p210 = por %p208, %p209
      %p212 = scmp.ne.s32.totalorder %s197, %s211
      %p213 = scmp.eq.s32.totalorder %s35, 0
      %p214 = por %p212, %p213
      %s216 = sadd.s32 %s215, 1
      %p219 = scmp.eq.s32.totalorder %s29, 1
      %p220 = scmp.ne.s32.totalorder %s215, %s217
      %p221 = scmp.eq.s32.totalorder %s29, 0
      %p222 = por %p220, %p221
      %p223 = scmp.ne.s32.totalorder %s215, %s217
      %p224 = scmp.eq.s32.totalorder %s34, 1
      %p225 = por %p223, %p224
      %p226 = scmp.ne.s32.totalorder %s217, %s218
      %p227 = scmp.eq.s32.totalorder %s34, 0
      %p228 = por %p226, %p227
      %p229 = scmp.ne.s32.totalorder %s217, %s218
      %p230 = scmp.eq.s32.totalorder %s35, 1
      %p231 = por %p229, %p230
      %p233 = scmp.ne.s32.totalorder %s218, %s232
      %p234 = scmp.eq.s32.totalorder %s35, 0
      %p235 = por %p233, %p234
      %s237 = sadd.s32 %s236, 1
      %p240 = scmp.eq.s32.totalorder %s29, 1
      %p241 = scmp.ne.s32.totalorder %s236, %s238
      %p242 = scmp.eq.s32.totalorder %s29, 0
      %p243 = por %p241, %p242
      %p244 = scmp.ne.s32.totalorder %s236, %s238
      %p245 = scmp.eq.s32.totalorder %s34, 1
      %p246 = por %p244, %p245
      %p247 = scmp.ne.s32.totalorder %s238, %s239
      %p248 = scmp.eq.s32.totalorder %s34, 0
      %p249 = por %p247, %p248
      %p250 = scmp.ne.s32.totalorder %s238, %s239
      %p251 = scmp.eq.s32.totalorder %s35, 1
      %p252 = por %p250, %p251
      %p254 = scmp.ne.s32.totalorder %s239, %s253
      %p255 = scmp.eq.s32.totalorder %s35, 0
      %p256 = por %p254, %p255
      %s258 = sadd.s32 %s257, 1
      %p261 = scmp.eq.s32.totalorder %s29, 1
      %p262 = scmp.ne.s32.totalorder %s257, %s259
      %p263 = scmp.eq.s32.totalorder %s29, 0
      %p264 = por %p262, %p263
      %p265 = scmp.ne.s32.totalorder %s257, %s259
      %p266 = scmp.eq.s32.totalorder %s34, 1
      %p267 = por %p265, %p266
      %p268 = scmp.ne.s32.totalorder %s259, %s260
      %p269 = scmp.eq.s32.totalorder %s34, 0
      %p270 = por %p268, %p269
      %p271 = scmp.ne.s32.totalorder %s259, %s260
      %p272 = scmp.eq.s32.totalorder %s35, 1
      %p273 = por %p271, %p272
      %p275 = scmp.ne.s32.totalorder %s260, %s274
      %p276 = scmp.eq.s32.totalorder %s35, 0
      %p277 = por %p275, %p276
      %s279 = sadd.s32 %s278, 1
      %p282 = scmp.eq.s32.totalorder %s29, 1
      %p283 = scmp.ne.s32.totalorder %s278, %s280
      %p284 = scmp.eq.s32.totalorder %s29, 0
      %p285 = por %p283, %p284
      %p286 = scmp.ne.s32.totalorder %s278, %s280
      %p287 = scmp.eq.s32.totalorder %s34, 1
      %p288 = por %p286, %p287
      %p289 = scmp.ne.s32.totalorder %s280, %s281
      %p290 = scmp.eq.s32.totalorder %s34, 0
      %p291 = por %p289, %p290
      %p292 = scmp.ne.s32.totalorder %s280, %s281
      %p293 = scmp.eq.s32.totalorder %s35, 1
      %p294 = por %p292, %p293
      %p296 = scmp.ne.s32.totalorder %s281, %s295
      %p297 = scmp.eq.s32.totalorder %s35, 0
      %p298 = por %p296, %p297
      %s300 = sadd.s32 %s299, 1
      %p303 = scmp.eq.s32.totalorder %s29, 1
      %p304 = scmp.ne.s32.totalorder %s299, %s301
      %p305 = scmp.eq.s32.totalorder %s29, 0
      %p306 = por %p304, %p305
      %p307 = scmp.ne.s32.totalorder %s299, %s301
      %p308 = scmp.eq.s32.totalorder %s34, 1
      %p309 = por %p307, %p308
      %p310 = scmp.ne.s32.totalorder %s301, %s302
      %p311 = scmp.eq.s32.totalorder %s34, 0
      %p312 = por %p310, %p311
      %p313 = scmp.ne.s32.totalorder %s301, %s302
      %p314 = scmp.eq.s32.totalorder %s35, 1
      %p315 = por %p313, %p314
      %p317 = scmp.ne.s32.totalorder %s302, %s316
      %p318 = scmp.eq.s32.totalorder %s35, 0
      %p319 = por %p317, %p318
      %s321 = sadd.s32 %s320, 1
      %p324 = scmp.eq.s32.totalorder %s29, 1
      %p325 = scmp.ne.s32.totalorder %s320, %s322
      %p326 = scmp.eq.s32.totalorder %s29, 0
      %p327 = por %p325, %p326
      %p328 = scmp.ne.s32.totalorder %s320, %s322
      %p329 = scmp.eq.s32.totalorder %s34, 1
      %p330 = por %p328, %p329
      %p331 = scmp.ne.s32.totalorder %s322, %s323
      %p332 = scmp.eq.s32.totalorder %s34, 0
      %p333 = por %p331, %p332
      %p334 = scmp.ne.s32.totalorder %s322, %s323
      %p335 = scmp.eq.s32.totalorder %s35, 1
      %p336 = por %p334, %p335
      %p338 = scmp.ne.s32.totalorder %s323, %s337
      %p339 = scmp.eq.s32.totalorder %s35, 0
      %p340 = por %p338, %p339
      %s342 = sadd.s32 %s341, 1
      %p345 = scmp.eq.s32.totalorder %s29, 1
      %p346 = scmp.ne.s32.totalorder %s341, %s343
      %p347 = scmp.eq.s32.totalorder %s29, 0
      %p348 = por %p346, %p347
      %p349 = scmp.ne.s32.totalorder %s341, %s343
      %p350 = scmp.eq.s32.totalorder %s34, 1
      %p351 = por %p349, %p350
      %p352 = scmp.ne.s32.totalorder %s343, %s344
      %p353 = scmp.eq.s32.totalorder %s34, 0
      %p354 = por %p352, %p353
      %p355 = scmp.ne.s32.totalorder %s343, %s344
      %p356 = scmp.eq.s32.totalorder %s35, 1
      %p357 = por %p355, %p356
      %p359 = scmp.ne.s32.totalorder %s344, %s358
      %p360 = scmp.eq.s32.totalorder %s35, 0
      %p361 = por %p359, %p360
      %s363 = sadd.s32 %s362, 1
      %p366 = scmp.eq.s32.totalorder %s29, 1
      %p367 = scmp.ne.s32.totalorder %s362, %s364
      %p368 = scmp.eq.s32.totalorder %s29, 0
      %p369 = por %p367, %p368
      %p370 = scmp.ne.s32.totalorder %s362, %s364
      %p371 = scmp.eq.s32.totalorder %s34, 1
      %p372 = por %p370, %p371
      %p373 = scmp.ne.s32.totalorder %s364, %s365
      %p374 = scmp.eq.s32.totalorder %s34, 0
      %p375 = por %p373, %p374
      %p376 = scmp.ne.s32.totalorder %s364, %s365
      %p377 = scmp.eq.s32.totalorder %s35, 1
      %p378 = por %p376, %p377
      %p380 = scmp.ne.s32.totalorder %s365, %s379
      %p381 = scmp.eq.s32.totalorder %s35, 0
      %p382 = por %p380, %p381
      %s384 = sadd.s32 %s383, 1
      %p387 = scmp.eq.s32.totalorder %s29, 1
      %p388 = scmp.ne.s32.totalorder %s383, %s385
      %p389 = scmp.eq.s32.totalorder %s29, 0
      %p390 = por %p388, %p389
      %p391 = scmp.ne.s32.totalorder %s383, %s385
      %p392 = scmp.eq.s32.totalorder %s34, 1
      %p393 = por %p391, %p392
      %p394 = scmp.ne.s32.totalorder %s385, %s386
      %p395 = scmp.eq.s32.totalorder %s34, 0
      %p396 = por %p394, %p395
      %p397 = scmp.ne.s32.totalorder %s385, %s386
      %p398 = scmp.eq.s32.totalorder %s35, 1
      %p399 = por %p397, %p398
      %p401 = scmp.ne.s32.totalorder %s386, %s400
      %p402 = scmp.eq.s32.totalorder %s35, 0
      %p403 = por %p401, %p402
      %s405 = sadd.s32 %s404, 1
      %p408 = scmp.eq.s32.totalorder %s29, 1
      %p409 = scmp.ne.s32.totalorder %s404, %s406
      %p410 = scmp.eq.s32.totalorder %s29, 0
      %p411 = por %p409, %p410
      %p412 = scmp.ne.s32.totalorder %s404, %s406
      %p413 = scmp.eq.s32.totalorder %s34, 1
      %p414 = por %p412, %p413
      %p415 = scmp.ne.s32.totalorder %s406, %s407
      %p416 = scmp.eq.s32.totalorder %s34, 0
      %p417 = por %p415, %p416
      %p418 = scmp.ne.s32.totalorder %s406, %s407
      %p419 = scmp.eq.s32.totalorder %s35, 1
      %p420 = por %p418, %p419
      %p422 = scmp.ne.s32.totalorder %s407, %s421
      %p423 = scmp.eq.s32.totalorder %s35, 0
      %p424 = por %p422, %p423
      %s426 = sadd.s32 %s425, 1
      %p429 = scmp.eq.s32.totalorder %s29, 1
      %p430 = scmp.ne.s32.totalorder %s425, %s427
      %p431 = scmp.eq.s32.totalorder %s29, 0
      %p432 = por %p430, %p431
      %p433 = scmp.ne.s32.totalorder %s425, %s427
      %p434 = scmp.eq.s32.totalorder %s34, 1
      %p435 = por %p433, %p434
      %p436 = scmp.ne.s32.totalorder %s427, %s428
      %p437 = scmp.eq.s32.totalorder %s34, 0
      %p438 = por %p436, %p437
      %p439 = scmp.ne.s32.totalorder %s427, %s428
      %p440 = scmp.eq.s32.totalorder %s35, 1
      %p441 = por %p439, %p440
      %p443 = scmp.ne.s32.totalorder %s428, %s442
      %p444 = scmp.eq.s32.totalorder %s35, 0
      %p445 = por %p443, %p444
      %s447 = sadd.s32 %s446, 1
      %p450 = scmp.eq.s32.totalorder %s29, 1
      %p451 = scmp.ne.s32.totalorder %s446, %s448
      %p452 = scmp.eq.s32.totalorder %s29, 0
      %p453 = por %p451, %p452
      %p454 = scmp.ne.s32.totalorder %s446, %s448
      %p455 = scmp.eq.s32.totalorder %s34, 1
      %p456 = por %p454, %p455
      %p457 = scmp.ne.s32.totalorder %s448, %s449
      %p458 = scmp.eq.s32.totalorder %s34, 0
      %p459 = por %p457, %p458
      %p460 = scmp.ne.s32.totalorder %s448, %s449
      %p461 = scmp.eq.s32.totalorder %s35, 1
      %p462 = por %p460, %p461
      %p464 = scmp.ne.s32.totalorder %s449, %s463
      %p465 = scmp.eq.s32.totalorder %s35, 0
      %p466 = por %p464, %p465
      %s467 = ssub.s32 %s29, %s36
      %p468 = scmp.eq.s32.totalorder %s467, 0
      %s470 = sadd.s32 %s469, 1
      %s471 = scalar_select %p468, %s469, %s470
      %p474 = pneg %p468
      %p475 = scmp.eq.s32.totalorder %s29, 1
      %p476 = por %p474, %p475
      %p477 = scmp.ne.s32.totalorder %s469, %s472
      %p478 = scmp.eq.s32.totalorder %s29, 0
      %p479 = por %p477, %p478
      %p480 = scmp.ne.s32.totalorder %s469, %s472
      %p481 = scmp.eq.s32.totalorder %s34, 1
      %p482 = por %p480, %p481
      %p483 = scmp.ne.s32.totalorder %s472, %s473
      %p484 = scmp.eq.s32.totalorder %s34, 0
      %p485 = por %p483, %p484
      %p486 = scmp.ne.s32.totalorder %s472, %s473
      %p487 = scmp.eq.s32.totalorder %s35, 1
      %p488 = por %p486, %p487
      %p490 = scmp.ne.s32.totalorder %s473, %s489
      %p491 = scmp.eq.s32.totalorder %s35, 0
      %p492 = por %p490, %p491
      %p493 = scmp.le.s32.totalorder 1, %s29
      %p494 = scmp.lt.s32.totalorder %s29, 3
      %p495 = pnand %p493, %p494
      %p496 = pneg %p495
      // Predicated region
      $region9: #{bert_wrapper_forward.1} parent=5 // pred_check
        _
      $region10: #{bert_wrapper_forward.1} parent=5 // pred_check_branch
        %498 = sbr.rel (%p495) target = $region12
      $region11: #{bert_wrapper_forward.1} parent=5 // pred_region
        %s499 = ssub.s32 %s29, 1
        // Predicated region
        $region13: #{bert_wrapper_forward.1} parent=11 // pred_check
          %p500 = pneg %p102
        $region14: #{bert_wrapper_forward.1} parent=11 // pred_check_branch
          %502 = sbr.rel (%p500) target = $region16
        $region15: #{bert_wrapper_forward.1} parent=11 // pred_region
          _
        $region16: #{bert_wrapper_forward.1} parent=11 // pred_fallthru
          _
        // Predicated region
        $region17: #{bert_wrapper_forward.1} parent=11 // pred_check
          %p503 = pneg %p123
        $region18: #{bert_wrapper_forward.1} parent=11 // pred_check_branch
          %505 = sbr.rel (%p503) target = $region20
        $region19: #{bert_wrapper_forward.1} parent=11 // pred_region
          _
        $region20: #{bert_wrapper_forward.1} parent=11 // pred_fallthru
          _
        // Predicated region
        $region21: #{bert_wrapper_forward.1} parent=11 // pred_check
          %p506 = pneg %p144
        $region22: #{bert_wrapper_forward.1} parent=11 // pred_check_branch
          %508 = sbr.rel (%p506) target = $region24
        $region23: #{bert_wrapper_forward.1} parent=11 // pred_region
          _
        $region24: #{bert_wrapper_forward.1} parent=11 // pred_fallthru
          _
        // Predicated region
        $region25: #{bert_wrapper_forward.1} parent=11 // pred_check
          %p509 = pneg %p165
        $region26: #{bert_wrapper_forward.1} parent=11 // pred_check_branch
          %511 = sbr.rel (%p509) target = $region28
        $region27: #{bert_wrapper_forward.1} parent=11 // pred_region
          _
        $region28: #{bert_wrapper_forward.1} parent=11 // pred_fallthru
          _
        // Predicated region
        $region29: #{bert_wrapper_forward.1} parent=11 // pred_check
          %p512 = pneg %p186
        $region30: #{bert_wrapper_forward.1} parent=11 // pred_check_branch
          %514 = sbr.rel (%p512) target = $region32
        $region31: #{bert_wrapper_forward.1} parent=11 // pred_region
          _
        $region32: #{bert_wrapper_forward.1} parent=11 // pred_fallthru
          _
        // Predicated region
        $region33: #{bert_wrapper_forward.1} parent=11 // pred_check
          %p515 = pneg %p207
        $region34: #{bert_wrapper_forward.1} parent=11 // pred_check_branch
          %517 = sbr.rel (%p515) target = $region36
        $region35: #{bert_wrapper_forward.1} parent=11 // pred_region
          _
        $region36: #{bert_wrapper_forward.1} parent=11 // pred_fallthru
          _
        // Predicated region
        $region37: #{bert_wrapper_forward.1} parent=11 // pred_check
          %p518 = pneg %p228
        $region38: #{bert_wrapper_forward.1} parent=11 // pred_check_branch
          %520 = sbr.rel (%p518) target = $region40
        $region39: #{bert_wrapper_forward.1} parent=11 // pred_region
          _
        $region40: #{bert_wrapper_forward.1} parent=11 // pred_fallthru
          _
        // Predicated region
        $region41: #{bert_wrapper_forward.1} parent=11 // pred_check
          %p521 = pneg %p249
        $region42: #{bert_wrapper_forward.1} parent=11 // pred_check_branch
          %523 = sbr.rel (%p521) target = $region44
        $region43: #{bert_wrapper_forward.1} parent=11 // pred_region
          _
        $region44: #{bert_wrapper_forward.1} parent=11 // pred_fallthru
          _
        // Predicated region
        $region45: #{bert_wrapper_forward.1} parent=11 // pred_check
          %p524 = pneg %p270
        $region46: #{bert_wrapper_forward.1} parent=11 // pred_check_branch
          %526 = sbr.rel (%p524) target = $region48
        $region47: #{bert_wrapper_forward.1} parent=11 // pred_region
          _
        $region48: #{bert_wrapper_forward.1} parent=11 // pred_fallthru
          _
        // Predicated region
        $region49: #{bert_wrapper_forward.1} parent=11 // pred_check
          %p527 = pneg %p291
        $region50: #{bert_wrapper_forward.1} parent=11 // pred_check_branch
          %529 = sbr.rel (%p527) target = $region52
        $region51: #{bert_wrapper_forward.1} parent=11 // pred_region
          _
        $region52: #{bert_wrapper_forward.1} parent=11 // pred_fallthru
          _
        // Predicated region
        $region53: #{bert_wrapper_forward.1} parent=11 // pred_check
          %p530 = pneg %p312
        $region54: #{bert_wrapper_forward.1} parent=11 // pred_check_branch
          %532 = sbr.rel (%p530) target = $region56
        $region55: #{bert_wrapper_forward.1} parent=11 // pred_region
          _
        $region56: #{bert_wrapper_forward.1} parent=11 // pred_fallthru
          _
        // Predicated region
        $region57: #{bert_wrapper_forward.1} parent=11 // pred_check
          %p533 = pneg %p333
        $region58: #{bert_wrapper_forward.1} parent=11 // pred_check_branch
          %535 = sbr.rel (%p533) target = $region60
        $region59: #{bert_wrapper_forward.1} parent=11 // pred_region
          _
        $region60: #{bert_wrapper_forward.1} parent=11 // pred_fallthru
          _
        // Predicated region
        $region61: #{bert_wrapper_forward.1} parent=11 // pred_check
          %p536 = pneg %p354
        $region62: #{bert_wrapper_forward.1} parent=11 // pred_check_branch
          %538 = sbr.rel (%p536) target = $region64
        $region63: #{bert_wrapper_forward.1} parent=11 // pred_region
          _
        $region64: #{bert_wrapper_forward.1} parent=11 // pred_fallthru
          _
        // Predicated region
        $region65: #{bert_wrapper_forward.1} parent=11 // pred_check
          %p539 = pneg %p375
        $region66: #{bert_wrapper_forward.1} parent=11 // pred_check_branch
          %541 = sbr.rel (%p539) target = $region68
        $region67: #{bert_wrapper_forward.1} parent=11 // pred_region
          _
        $region68: #{bert_wrapper_forward.1} parent=11 // pred_fallthru
          _
        // Predicated region
        $region69: #{bert_wrapper_forward.1} parent=11 // pred_check
          %p542 = pneg %p396
        $region70: #{bert_wrapper_forward.1} parent=11 // pred_check_branch
          %544 = sbr.rel (%p542) target = $region72
        $region71: #{bert_wrapper_forward.1} parent=11 // pred_region
          _
        $region72: #{bert_wrapper_forward.1} parent=11 // pred_fallthru
          _
        // Predicated region
        $region73: #{bert_wrapper_forward.1} parent=11 // pred_check
          %p545 = pneg %p417
        $region74: #{bert_wrapper_forward.1} parent=11 // pred_check_branch
          %547 = sbr.rel (%p545) target = $region76
        $region75: #{bert_wrapper_forward.1} parent=11 // pred_region
          _
        $region76: #{bert_wrapper_forward.1} parent=11 // pred_fallthru
          _
        // Predicated region
        $region77: #{bert_wrapper_forward.1} parent=11 // pred_check
          %p548 = pneg %p438
        $region78: #{bert_wrapper_forward.1} parent=11 // pred_check_branch
          %550 = sbr.rel (%p548) target = $region80
        $region79: #{bert_wrapper_forward.1} parent=11 // pred_region
          _
        $region80: #{bert_wrapper_forward.1} parent=11 // pred_fallthru
          _
        // Predicated region
        $region81: #{bert_wrapper_forward.1} parent=11 // pred_check
          %p551 = pneg %p459
        $region82: #{bert_wrapper_forward.1} parent=11 // pred_check_branch
          %553 = sbr.rel (%p551) target = $region84
        $region83: #{bert_wrapper_forward.1} parent=11 // pred_region
          _
        $region84: #{bert_wrapper_forward.1} parent=11 // pred_fallthru
          _
      $region12: #{bert_wrapper_forward.1} parent=5 // pred_fallthru
        _
      %p554 = scmp.lt.s32.totalorder %s29, 2
      // Predicated region
      $region85: #{bert_wrapper_forward.1} parent=5 // pred_check
        %p555 = pneg %p554
      $region86: #{bert_wrapper_forward.1} parent=5 // pred_check_branch
        %557 = sbr.rel (%p555) target = $region88
      $region87: #{bert_wrapper_forward.1} parent=5 // pred_region
        // Predicated region
        $region89: #{bert_wrapper_forward.1} parent=87 // pred_check
          %p558 = pneg %p49
        $region90: #{bert_wrapper_forward.1} parent=87 // pred_check_branch
          %560 = sbr.rel (%p558) target = $region92
        $region91: #{bert_wrapper_forward.1} parent=87 // pred_region
          %p561 = scmp.lt.s32.totalorder %s29, 1
          %s562 = scalar_select %p561, %s29, 1
          %s563 = smul.addr %s562, 8
          %s564 = scalar_lea.vmem %s0, %s563
        $region92: #{bert_wrapper_forward.1} parent=87 // pred_fallthru
          _
        // Predicated region
        $region93: #{bert_wrapper_forward.1} parent=87 // pred_check
          %p565 = pneg %p75
        $region94: #{bert_wrapper_forward.1} parent=87 // pred_check_branch
          %567 = sbr.rel (%p565) target = $region96
        $region95: #{bert_wrapper_forward.1} parent=87 // pred_region
          %p568 = scmp.lt.s32.totalorder %s29, 1
          %s569 = scalar_select %p568, %s29, 1
          %s570 = scalar_lea.vmem %s1, %s569
        $region96: #{bert_wrapper_forward.1} parent=87 // pred_fallthru
          _
      $region88: #{bert_wrapper_forward.1} parent=5 // pred_fallthru
        _
      %p571 = scmp.le.s32.totalorder 1, %s29
      %p572 = scmp.lt.s32.totalorder %s29, 3
      %p573 = pnand %p571, %p572
      %p574 = pneg %p573
      // Predicated region
      $region97: #{bert_wrapper_forward.1} parent=5 // pred_check
        _
      $region98: #{bert_wrapper_forward.1} parent=5 // pred_check_branch
        %576 = sbr.rel (%p573) target = $region100
      $region99: #{bert_wrapper_forward.1} parent=5 // pred_region
        %s577 = ssub.s32 %s29, 1
        %p578 = scmp.lt.s32.totalorder %s34, 1
        %s579 = scalar_select %p578, %s34, 1
        %s580 = smul.addr %s579, 8
        %s581 = scalar_lea.vmem %s0, %s580
        %p582 = pneg %p55
        %p583 = pneg %p52
        %p584 = scmp.lt.s32.totalorder %s34, 1
        %s585 = scalar_select %p584, %s34, 1
        %s586 = scalar_lea.vmem %s1, %s585
        %p587 = pneg %p81
        %p588 = pneg %p78
        %p589 = pneg %p102
        %p590 = pneg %p99
        %p591 = pneg %p123
        %p592 = pneg %p120
        %p593 = pneg %p144
        %p594 = pneg %p141
        %p595 = pneg %p165
        %p596 = pneg %p162
        %p597 = pneg %p186
        %p598 = pneg %p183
        %p599 = pneg %p207
        %p600 = pneg %p204
        %p601 = pneg %p228
        %p602 = pneg %p225
        %p603 = pneg %p249
        %p604 = pneg %p246
        %p605 = pneg %p270
        %p606 = pneg %p267
        %p607 = pneg %p291
        %p608 = pneg %p288
        %p609 = pneg %p312
        %p610 = pneg %p309
        %p611 = pneg %p333
        %p612 = pneg %p330
        %p613 = pneg %p354
        %p614 = pneg %p351
        %p615 = pneg %p375
        %p616 = pneg %p372
        %p617 = pneg %p396
        %p618 = pneg %p393
        %p619 = pneg %p417
        %p620 = pneg %p414
        %p621 = pneg %p438
        %p622 = pneg %p435
        %p623 = pneg %p459
        %p624 = pneg %p456
        %p625 = pneg %p485
        %p626 = pneg %p482
        %s627 = sand.u32 %s472, 1
        %s628 = scalar_lea.sflag [#allocation3], %s627
        %s629 = sand.u32 %s472, 1
        %s630 = scalar_lea.vmem [#allocation2], %s629
        %p631 = scmp.lt.s32.totalorder %s34, 1
        %s632 = scalar_select %p631, %s34, 1
        %s633 = smul.addr %s632, 8
        %s634 = scalar_lea.vmem %s0, %s633
        %p635 = scmp.lt.s32.totalorder %s34, 1
        %s636 = scalar_select %p635, %s34, 1
        %s637 = scalar_lea.vmem %s1, %s636
        %v639 = vld [vmem:[%s634] sm:$0xff]
        %v640 = vld [vmem:[%s637] sm:$0x1]
        %v641 = vld [vmem:[%s2] sm:$0x1]
        %v642 = vld [vmem:[%s3] sm:$0x1]
        %vm643 = vcmask 261120
        %v644 = vsel %vm643, %v639, 0.0
        %645 = vadd.xlane.f32.xlu0 %v644
        %v646 = vpop.xlane.xlu0 %645
        %v647 = vrcp.pop 32.0
        %v648 = vmul.f32 %v646, %v647
        %v649 = vsub.f32 %v639, %v648
        %v650 = vmul.f32 %v649, %v649
        %v651 = vsel %vm643, %v650, 0.0
        %652 = vadd.xlane.f32.xlu0 %v651
        %v653 = vpop.xlane.xlu0 %652
        %v654 = vmul.f32 %v653, %v647
        %v655 = vadd.f32 %v654, 1e-12
        %v656 = vrsqrt.pop %v655
        %v657 = vmul.f32 %v649, %v656
        %v659 = vlaneseq
        %v660 = vshrl.u32 %v659, 7
        %v661 = vsub.s32 0, %v660
        %v662 = vrot.slane %v641, %v661
        %v664 = vmul.f32 %v657, %v662
        %v666 = vlaneseq
        %v667 = vshrl.u32 %v666, 7
        %v668 = vsub.s32 0, %v667
        %v669 = vrot.slane %v642, %v668
        %v671 = vadd.f32 %v664, %v669
        %v672 = vld [vmem:[%s4] sm:$0xff]
        %v673 = vld [vmem:[%s4 + $0x8] sm:$0xff]
        %v674 = vld [vmem:[%s4 + $0x10] sm:$0xff]
        %v675 = vld [vmem:[%s4 + $0x18] sm:$0xff]
        %v676 = vpack.c.bf16 %v671, %v671
        %v677 = vpack.c.bf16 %v673, %v672
        %v678 = vpack.c.bf16 %v675, %v674
        %v679 = vld [vmem:[%s5] sm:$0x1]
        %v681 = vlaneseq
        %v682 = vshrl.u32 %v681, 7
        %v683 = vsub.s32 0, %v682
        %v684 = vrot.slane %v679, %v683
        %v687 = vsel %vm643, %v676, 0
        %689 = vmatprep.subr.bf16.mxu0 0
        %690 = vmatpush1.bf16.msra.mxu0 %v677
        %691 = vmatprep.subr.bf16.mxu0 0
        %692 = vmatpush1.bf16.msra.mxu0 %v678
        %693 = vmatprep.subr.bf16.mxu0 0
        %694 = vmatpush1.bf16.msra.mxu0 0
        %695 = vmatprep.subr.bf16.mxu0 0
        %696 = vmatpush1.bf16.msra.mxu0 0
        %697 = vmatprep.subr.bf16.mxu0 0
        %698 = vmatpush1.bf16.msra.mxu0 0
        %699 = vmatprep.subr.bf16.mxu0 0
        %700 = vmatpush1.bf16.msra.mxu0 0
        %701 = vmatprep.subr.bf16.mxu0 0
        %702 = vmatpush1.bf16.msra.mxu0 0
        %703 = vmatprep.subr.bf16.mxu0 0
        %704 = vmatpush1.bf16.msra.mxu0 0
        %705 = vmatprep.subr.bf16.mxu0 0
        %706 = vmatpush1.bf16.msra.mxu0 0
        %707 = vmatprep.subr.bf16.mxu0 0
        %708 = vmatpush1.bf16.msra.mxu0 0
        %709 = vmatprep.subr.bf16.mxu0 0
        %710 = vmatpush1.bf16.msra.mxu0 0
        %711 = vmatprep.subr.bf16.mxu0 0
        %712 = vmatpush1.bf16.msra.mxu0 0
        %713 = vmatprep.subr.bf16.mxu0 0
        %714 = vmatpush1.bf16.msra.mxu0 0
        %715 = vmatprep.subr.bf16.mxu0 0
        %716 = vmatpush1.bf16.msra.mxu0 0
        %717 = vmatprep.subr.bf16.mxu0 0
        %718 = vmatpush1.bf16.msra.mxu0 0
        %719 = vmatprep.subr.bf16.mxu0 0
        %720 = vmatpush1.bf16.msra.mxu0 0
        %721 = vmatprep.mubr.bf16.mxu0 0
        %722 = vmatmul.mubr.bf16.gmra.mrb[0].mxu0 %v687
        %v723 = vpop.f32.mrb[0].mxu0
        %v724 = vadd.f32 %v684, %v723
        %v725 = vpop.f32.mrb[0].mxu0
        %v726 = vpop.f32.mrb[0].mxu0
        %v727 = vpop.f32.mrb[0].mxu0
        %728 = vdwg.mxu0
        %v729 = vpack.c.bf16 %v724, %v724
        %731 = vrot.lane.b32.xlu0 %v729, 96
        %v732 = vpop.permute.xlu0 %731
        %vm733 = vcmask 130048
        %v735 = vsel %vm733, %v729, 0
        %v738 = vsel %vm733, %v732, 0
        %740 = vmatprep.subr.bf16.mxu0 0
        %741 = vmatpush1.bf16.xpose.msra.mxu0 %v738
        %742 = vmatprep.subr.bf16.mxu0 0
        %743 = vmatpush1.bf16.xpose.msra.mxu0 0
        %744 = vmatprep.subr.bf16.mxu0 0
        %745 = vmatpush1.bf16.xpose.msra.mxu0 0
        %746 = vmatprep.subr.bf16.mxu0 0
        %747 = vmatpush1.bf16.xpose.msra.mxu0 0
        %748 = vmatprep.subr.bf16.mxu0 0
        %749 = vmatpush1.bf16.xpose.msra.mxu0 0
        %750 = vmatprep.subr.bf16.mxu0 0
        %751 = vmatpush1.bf16.xpose.msra.mxu0 0
        %752 = vmatprep.subr.bf16.mxu0 0
        %753 = vmatpush1.bf16.xpose.msra.mxu0 0
        %754 = vmatprep.subr.bf16.mxu0 0
        %755 = vmatpush1.bf16.xpose.msra.mxu0 0
        %756 = vmatprep.subr.bf16.mxu0 0
        %757 = vmatpush1.bf16.xpose.msra.mxu0 0
        %758 = vmatprep.subr.bf16.mxu0 0
        %759 = vmatpush1.bf16.xpose.msra.mxu0 0
        %760 = vmatprep.subr.bf16.mxu0 0
        %761 = vmatpush1.bf16.xpose.msra.mxu0 0
        %762 = vmatprep.subr.bf16.mxu0 0
        %763 = vmatpush1.bf16.xpose.msra.mxu0 0
        %764 = vmatprep.subr.bf16.mxu0 0
        %765 = vmatpush1.bf16.xpose.msra.mxu0 0
        %766 = vmatprep.subr.bf16.mxu0 0
        %767 = vmatpush1.bf16.xpose.msra.mxu0 0
        %768 = vmatprep.subr.bf16.mxu0 0
        %769 = vmatpush1.bf16.xpose.msra.mxu0 0
        %770 = vmatprep.subr.bf16.mxu0 0
        %771 = vmatpush1.bf16.xpose.msra.mxu0 0
        %772 = vmatprep.mubr.bf16.mxu0 0
        %773 = vmatmul.mubr.bf16.gmra.mrb[0].mxu0 %v735
        %v774 = vpop.f32.mrb[0].mxu0
        %v775 = vadd.f32 0.0, %v774
        %v776 = vpop.f32.mrb[0].mxu0
        %v777 = vpop.f32.mrb[0].mxu0
        %v778 = vpop.f32.mrb[0].mxu0
        %779 = vdwg.mxu0
        %v780 = vmul.f32 %v775, 0.25
        %v782 = vlaneseq
        %v783 = vshrl.u32 %v782, 7
        %v784 = vsub.s32 0, %v783
        %v785 = vrot.slane %v640, %v784
        %v787 = vadd.f32 %v780, %v785
        %vm788 = vcmask 64512
        %v789 = vsel %vm788, %v787, -inf
        %790 = vmax.xlane.f32.xlu0 %v789
        %v791 = vpop.xlane.xlu0 %790
        %v792 = vsub.f32 %v787, %v791
        %v793 = vmul.f32 %v792, 1.442695
        %v794 = vpow.pop %v793
        %v795 = vsel %vm788, %v794, 0.0
        %796 = vadd.xlane.f32.xlu0 %v795
        %v797 = vpop.xlane.xlu0 %796
        %v798 = vrcp.pop %v797
        %v799 = vmul.f32 %v794, %v798
        %v800 = vpack.c.bf16 %v799, %v799
        %801 = vrot.lane.b32.xlu0 %v729, 64
        %v802 = vpop.permute.xlu0 %801
        %v804 = vsel %vm788, %v800, 0
        %vm806 = vcmask 1043456
        %v808 = vsel %vm806, %v802, 0
        %810 = vmatprep.subr.bf16.mxu0 0
        %811 = vmatpush1.bf16.msra.mxu0 %v808
        %812 = vmatprep.subr.bf16.mxu0 0
        %813 = vmatpush1.bf16.msra.mxu0 0
        %814 = vmatprep.subr.bf16.mxu0 0
        %815 = vmatpush1.bf16.msra.mxu0 0
        %816 = vmatprep.subr.bf16.mxu0 0
        %817 = vmatpush1.bf16.msra.mxu0 0
        %818 = vmatprep.subr.bf16.mxu0 0
        %819 = vmatpush1.bf16.msra.mxu0 0
        %820 = vmatprep.subr.bf16.mxu0 0
        %821 = vmatpush1.bf16.msra.mxu0 0
        %822 = vmatprep.subr.bf16.mxu0 0
        %823 = vmatpush1.bf16.msra.mxu0 0
        %824 = vmatprep.subr.bf16.mxu0 0
        %825 = vmatpush1.bf16.msra.mxu0 0
        %826 = vmatprep.subr.bf16.mxu0 0
        %827 = vmatpush1.bf16.msra.mxu0 0
        %828 = vmatprep.subr.bf16.mxu0 0
        %829 = vmatpush1.bf16.msra.mxu0 0
        %830 = vmatprep.subr.bf16.mxu0 0
        %831 = vmatpush1.bf16.msra.mxu0 0
        %832 = vmatprep.subr.bf16.mxu0 0
        %833 = vmatpush1.bf16.msra.mxu0 0
        %834 = vmatprep.subr.bf16.mxu0 0
        %835 = vmatpush1.bf16.msra.mxu0 0
        %836 = vmatprep.subr.bf16.mxu0 0
        %837 = vmatpush1.bf16.msra.mxu0 0
        %838 = vmatprep.subr.bf16.mxu0 0
        %839 = vmatpush1.bf16.msra.mxu0 0
        %840 = vmatprep.subr.bf16.mxu0 0
        %841 = vmatpush1.bf16.msra.mxu0 0
        %842 = vmatprep.mubr.bf16.mxu0 0
        %843 = vmatmul.mubr.bf16.gmra.mrb[0].mxu0 %v804
        %v844 = vpop.f32.mrb[0].mxu0
        %v845 = vadd.f32 0.0, %v844
        %v846 = vpop.f32.mrb[0].mxu0
        %v847 = vpop.f32.mrb[0].mxu0
        %v848 = vpop.f32.mrb[0].mxu0
        %849 = vdwg.mxu0
        %850 = vrot.lane.b32.xlu0 %v729, 112
        %v851 = vpop.permute.xlu0 %850
        %852 = vrot.lane.b32.xlu0 %v729, 80
        %v853 = vpop.permute.xlu0 %852
        %v855 = vsel %vm733, %v851, 0
        %v858 = vsel %vm733, %v853, 0
        %860 = vmatprep.subr.bf16.mxu0 0
        %861 = vmatpush1.bf16.xpose.msra.mxu0 %v858
        %862 = vmatprep.subr.bf16.mxu0 0
        %863 = vmatpush1.bf16.xpose.msra.mxu0 0
        %864 = vmatprep.subr.bf16.mxu0 0
        %865 = vmatpush1.bf16.xpose.msra.mxu0 0
        %866 = vmatprep.subr.bf16.mxu0 0
        %867 = vmatpush1.bf16.xpose.msra.mxu0 0
        %868 = vmatprep.subr.bf16.mxu0 0
        %869 = vmatpush1.bf16.xpose.msra.mxu0 0
        %870 = vmatprep.subr.bf16.mxu0 0
        %871 = vmatpush1.bf16.xpose.msra.mxu0 0
        %872 = vmatprep.subr.bf16.mxu0 0
        %873 = vmatpush1.bf16.xpose.msra.mxu0 0
        %874 = vmatprep.subr.bf16.mxu0 0
        %875 = vmatpush1.bf16.xpose.msra.mxu0 0
        %876 = vmatprep.subr.bf16.mxu0 0
        %877 = vmatpush1.bf16.xpose.msra.mxu0 0
        %878 = vmatprep.subr.bf16.mxu0 0
        %879 = vmatpush1.bf16.xpose.msra.mxu0 0
        %880 = vmatprep.subr.bf16.mxu0 0
        %881 = vmatpush1.bf16.xpose.msra.mxu0 0
        %882 = vmatprep.subr.bf16.mxu0 0
        %883 = vmatpush1.bf16.xpose.msra.mxu0 0
        %884 = vmatprep.subr.bf16.mxu0 0
        %885 = vmatpush1.bf16.xpose.msra.mxu0 0
        %886 = vmatprep.subr.bf16.mxu0 0
        %887 = vmatpush1.bf16.xpose.msra.mxu0 0
        %888 = vmatprep.subr.bf16.mxu0 0
        %889 = vmatpush1.bf16.xpose.msra.mxu0 0
        %890 = vmatprep.subr.bf16.mxu0 0
        %891 = vmatpush1.bf16.xpose.msra.mxu0 0
        %892 = vmatprep.mubr.bf16.mxu0 0
        %893 = vmatmul.mubr.bf16.gmra.mrb[0].mxu0 %v855
        %v894 = vpop.f32.mrb[0].mxu0
        %v895 = vadd.f32 0.0, %v894
        %v896 = vpop.f32.mrb[0].mxu0
        %v897 = vpop.f32.mrb[0].mxu0
        %v898 = vpop.f32.mrb[0].mxu0
        %899 = vdwg.mxu0
        %v900 = vmul.f32 %v895, 0.25
        %v901 = vadd.f32 %v900, %v785
        %v902 = vsel %vm788, %v901, -inf
        %903 = vmax.xlane.f32.xlu0 %v902
        %v904 = vpop.xlane.xlu0 %903
        %v905 = vsub.f32 %v901, %v904
        %v906 = vmul.f32 %v905, 1.442695
        %v907 = vpow.pop %v906
        %v908 = vsel %vm788, %v907, 0.0
        %909 = vadd.xlane.f32.xlu0 %v908
        %v910 = vpop.xlane.xlu0 %909
        %v911 = vrcp.pop %v910
        %v912 = vmul.f32 %v907, %v911
        %v913 = vpack.c.bf16 %v912, %v912
        %914 = vrot.lane.b32.xlu0 %v729, 48
        %v915 = vpop.permute.xlu0 %914
        %v917 = vsel %vm788, %v913, 0
        %v920 = vsel %vm806, %v915, 0
        %922 = vmatprep.subr.bf16.mxu0 0
        %923 = vmatpush1.bf16.msra.mxu0 %v920
        %924 = vmatprep.subr.bf16.mxu0 0
        %925 = vmatpush1.bf16.msra.mxu0 0
        %926 = vmatprep.subr.bf16.mxu0 0
        %927 = vmatpush1.bf16.msra.mxu0 0
        %928 = vmatprep.subr.bf16.mxu0 0
        %929 = vmatpush1.bf16.msra.mxu0 0
        %930 = vmatprep.subr.bf16.mxu0 0
        %931 = vmatpush1.bf16.msra.mxu0 0
        %932 = vmatprep.subr.bf16.mxu0 0
        %933 = vmatpush1.bf16.msra.mxu0 0
        %934 = vmatprep.subr.bf16.mxu0 0
        %935 = vmatpush1.bf16.msra.mxu0 0
        %936 = vmatprep.subr.bf16.mxu0 0
        %937 = vmatpush1.bf16.msra.mxu0 0
        %938 = vmatprep.subr.bf16.mxu0 0
        %939 = vmatpush1.bf16.msra.mxu0 0
        %940 = vmatprep.subr.bf16.mxu0 0
        %941 = vmatpush1.bf16.msra.mxu0 0
        %942 = vmatprep.subr.bf16.mxu0 0
        %943 = vmatpush1.bf16.msra.mxu0 0
        %944 = vmatprep.subr.bf16.mxu0 0
        %945 = vmatpush1.bf16.msra.mxu0 0
        %946 = vmatprep.subr.bf16.mxu0 0
        %947 = vmatpush1.bf16.msra.mxu0 0
        %948 = vmatprep.subr.bf16.mxu0 0
        %949 = vmatpush1.bf16.msra.mxu0 0
        %950 = vmatprep.subr.bf16.mxu0 0
        %951 = vmatpush1.bf16.msra.mxu0 0
        %952 = vmatprep.subr.bf16.mxu0 0
        %953 = vmatpush1.bf16.msra.mxu0 0
        %954 = vmatprep.mubr.bf16.mxu0 0
        %955 = vmatmul.mubr.bf16.gmra.mrb[0].mxu0 %v917
        %v956 = vpop.f32.mrb[0].mxu0
        %v957 = vadd.f32 0.0, %v956
        %v958 = vpop.f32.mrb[0].mxu0
        %v959 = vpop.f32.mrb[0].mxu0
        %v960 = vpop.f32.mrb[0].mxu0
        %961 = vdwg.mxu0
        %963 = vrot.lane.b32.xlu0 %v957, 16
        %v964 = vpop.permute.xlu0 %963
        %v966 = vsel %vm733, %v845, %v964
        %v967 = vld [vmem:[%s6] sm:$0xff]
        %v968 = vld [vmem:[%s6 + $0x8] sm:$0xff]
        %v969 = vld [vmem:[%s6 + $0x10] sm:$0xff]
        %v970 = vld [vmem:[%s6 + $0x18] sm:$0xff]
        %v971 = vpack.c.bf16 %v966, %v966
        %v972 = vpack.c.bf16 %v968, %v967
        %v973 = vpack.c.bf16 %v970, %v969
        %v974 = vld [vmem:[%s7] sm:$0x1]
        %v976 = vlaneseq
        %v977 = vshrl.u32 %v976, 7
        %v978 = vsub.s32 0, %v977
        %v979 = vrot.slane %v974, %v978
        %v982 = vsel %vm643, %v971, 0
        %984 = vmatprep.subr.bf16.mxu0 0
        %985 = vmatpush1.bf16.msra.mxu0 %v972
        %986 = vmatprep.subr.bf16.mxu0 0
        %987 = vmatpush1.bf16.msra.mxu0 %v973
        %988 = vmatprep.subr.bf16.mxu0 0
        %989 = vmatpush1.bf16.msra.mxu0 0
        %990 = vmatprep.subr.bf16.mxu0 0
        %991 = vmatpush1.bf16.msra.mxu0 0
        %992 = vmatprep.subr.bf16.mxu0 0
        %993 = vmatpush1.bf16.msra.mxu0 0
        %994 = vmatprep.subr.bf16.mxu0 0
        %995 = vmatpush1.bf16.msra.mxu0 0
        %996 = vmatprep.subr.bf16.mxu0 0
        %997 = vmatpush1.bf16.msra.mxu0 0
        %998 = vmatprep.subr.bf16.mxu0 0
        %999 = vmatpush1.bf16.msra.mxu0 0
        %1000 = vmatprep.subr.bf16.mxu0 0
        %1001 = vmatpush1.bf16.msra.mxu0 0
        %1002 = vmatprep.subr.bf16.mxu0 0
        %1003 = vmatpush1.bf16.msra.mxu0 0
        %1004 = vmatprep.subr.bf16.mxu0 0
        %1005 = vmatpush1.bf16.msra.mxu0 0
        %1006 = vmatprep.subr.bf16.mxu0 0
        %1007 = vmatpush1.bf16.msra.mxu0 0
        %1008 = vmatprep.subr.bf16.mxu0 0
        %1009 = vmatpush1.bf16.msra.mxu0 0
        %1010 = vmatprep.subr.bf16.mxu0 0
        %1011 = vmatpush1.bf16.msra.mxu0 0
        %1012 = vmatprep.subr.bf16.mxu0 0
        %1013 = vmatpush1.bf16.msra.mxu0 0
        %1014 = vmatprep.subr.bf16.mxu0 0
        %1015 = vmatpush1.bf16.msra.mxu0 0
        %1016 = vmatprep.mubr.bf16.mxu0 0
        %1017 = vmatmul.mubr.bf16.gmra.mrb[0].mxu0 %v982
        %v1018 = vpop.f32.mrb[0].mxu0
        %v1019 = vadd.f32 %v979, %v1018
        %v1020 = vpop.f32.mrb[0].mxu0
        %v1021 = vpop.f32.mrb[0].mxu0
        %v1022 = vpop.f32.mrb[0].mxu0
        %1023 = vdwg.mxu0
        %v1024 = vadd.f32 %v671, %v1019
        %v1025 = vld [vmem:[%s8] sm:$0x1]
        %v1026 = vld [vmem:[%s9] sm:$0x1]
        %v1027 = vsel %vm643, %v1024, 0.0
        %1028 = vadd.xlane.f32.xlu0 %v1027
        %v1029 = vpop.xlane.xlu0 %1028
        %v1030 = vmul.f32 %v1029, %v647
        %v1031 = vsub.f32 %v1024, %v1030
        %v1032 = vmul.f32 %v1031, %v1031
        %v1033 = vsel %vm643, %v1032, 0.0
        %1034 = vadd.xlane.f32.xlu0 %v1033
        %v1035 = vpop.xlane.xlu0 %1034
        %v1036 = vmul.f32 %v1035, %v647
        %v1037 = vadd.f32 %v1036, 1e-12
        %v1038 = vrsqrt.pop %v1037
        %v1039 = vmul.f32 %v1031, %v1038
        %v1041 = vlaneseq
        %v1042 = vshrl.u32 %v1041, 7
        %v1043 = vsub.s32 0, %v1042
        %v1044 = vrot.slane %v1025, %v1043
        %v1046 = vmul.f32 %v1039, %v1044
        %v1048 = vlaneseq
        %v1049 = vshrl.u32 %v1048, 7
        %v1050 = vsub.s32 0, %v1049
        %v1051 = vrot.slane %v1026, %v1050
        %v1053 = vadd.f32 %v1046, %v1051
        %v1054 = vld [vmem:[%s10] sm:$0xff]
        %v1055 = vld [vmem:[%s10 + $0x8] sm:$0xff]
        %v1056 = vld [vmem:[%s10 + $0x10] sm:$0xff]
        %v1057 = vld [vmem:[%s10 + $0x18] sm:$0xff]
        %v1058 = vpack.c.bf16 %v1053, %v1053
        %v1059 = vpack.c.bf16 %v1055, %v1054
        %v1060 = vpack.c.bf16 %v1057, %v1056
        %v1061 = vld [vmem:[%s11] sm:$0x1]
        %v1063 = vlaneseq
        %v1064 = vshrl.u32 %v1063, 7
        %v1065 = vsub.s32 0, %v1064
        %v1066 = vrot.slane %v1061, %v1065
        %v1069 = vsel %vm643, %v1058, 0
        %1071 = vmatprep.subr.bf16.mxu0 0
        %1072 = vmatpush1.bf16.msra.mxu0 %v1059
        %1073 = vmatprep.subr.bf16.mxu0 0
        %1074 = vmatpush1.bf16.msra.mxu0 %v1060
        %1075 = vmatprep.subr.bf16.mxu0 0
        %1076 = vmatpush1.bf16.msra.mxu0 0
        %1077 = vmatprep.subr.bf16.mxu0 0
        %1078 = vmatpush1.bf16.msra.mxu0 0
        %1079 = vmatprep.subr.bf16.mxu0 0
        %1080 = vmatpush1.bf16.msra.mxu0 0
        %1081 = vmatprep.subr.bf16.mxu0 0
        %1082 = vmatpush1.bf16.msra.mxu0 0
        %1083 = vmatprep.subr.bf16.mxu0 0
        %1084 = vmatpush1.bf16.msra.mxu0 0
        %1085 = vmatprep.subr.bf16.mxu0 0
        %1086 = vmatpush1.bf16.msra.mxu0 0
        %1087 = vmatprep.subr.bf16.mxu0 0
        %1088 = vmatpush1.bf16.msra.mxu0 0
        %1089 = vmatprep.subr.bf16.mxu0 0
        %1090 = vmatpush1.bf16.msra.mxu0 0
        %1091 = vmatprep.subr.bf16.mxu0 0
        %1092 = vmatpush1.bf16.msra.mxu0 0
        %1093 = vmatprep.subr.bf16.mxu0 0
        %1094 = vmatpush1.bf16.msra.mxu0 0
        %1095 = vmatprep.subr.bf16.mxu0 0
        %1096 = vmatpush1.bf16.msra.mxu0 0
        %1097 = vmatprep.subr.bf16.mxu0 0
        %1098 = vmatpush1.bf16.msra.mxu0 0
        %1099 = vmatprep.subr.bf16.mxu0 0
        %1100 = vmatpush1.bf16.msra.mxu0 0
        %1101 = vmatprep.subr.bf16.mxu0 0
        %1102 = vmatpush1.bf16.msra.mxu0 0
        %1103 = vmatprep.mubr.bf16.mxu0 0
        %1104 = vmatmul.mubr.bf16.gmra.mrb[0].mxu0 %v1069
        %v1105 = vpop.f32.mrb[0].mxu0
        %v1106 = vadd.f32 %v1066, %v1105
        %v1107 = vpop.f32.mrb[0].mxu0
        %v1108 = vpop.f32.mrb[0].mxu0
        %v1109 = vpop.f32.mrb[0].mxu0
        %1110 = vdwg.mxu0
        %v1111 = vmul.f32 %v1106, 0.5
        %v1112 = vmul.f32 %v1106, 0.044715
        %v1113 = vmul.f32 %v1112, %v1106
        %v1114 = vmul.f32 %v1113, %v1106
        %v1115 = vadd.f32 %v1106, %v1114
        %v1116 = vmul.f32 %v1115, 0.7978846
        %v1117 = vtanh.pop %v1116
        %v1118 = vadd.f32 %v1117, 1.0
        %v1119 = vmul.f32 %v1111, %v1118
        %v1120 = vld [vmem:[%s12] sm:$0xff]
        %v1121 = vld [vmem:[%s12 + $0x8] sm:$0xff]
        %v1122 = vld [vmem:[%s12 + $0x10] sm:$0xff]
        %v1123 = vld [vmem:[%s12 + $0x18] sm:$0xff]
        %v1124 = vld [vmem:[%s12 + $0x20] sm:$0xff]
        %v1125 = vld [vmem:[%s12 + $0x28] sm:$0xff]
        %v1126 = vld [vmem:[%s12 + $0x30] sm:$0xff]
        %v1127 = vld [vmem:[%s12 + $0x38] sm:$0xff]
        %v1128 = vpack.c.bf16 %v1119, %v1119
        %v1129 = vpack.c.bf16 %v1121, %v1120
        %v1130 = vpack.c.bf16 %v1123, %v1122
        %v1131 = vpack.c.bf16 %v1125, %v1124
        %v1132 = vpack.c.bf16 %v1127, %v1126
        %v1133 = vld [vmem:[%s13] sm:$0x1]
        %v1135 = vlaneseq
        %v1136 = vshrl.u32 %v1135, 7
        %v1137 = vsub.s32 0, %v1136
        %v1138 = vrot.slane %v1133, %v1137
        %vm1140 = vcmask 523264
        %v1142 = vsel %vm1140, %v1128, 0
        %1144 = vmatprep.subr.bf16.mxu0 0
        %1145 = vmatpush1.bf16.msra.mxu0 %v1129
        %1146 = vmatprep.subr.bf16.mxu0 0
        %1147 = vmatpush1.bf16.msra.mxu0 %v1130
        %1148 = vmatprep.subr.bf16.mxu0 0
        %1149 = vmatpush1.bf16.msra.mxu0 %v1131
        %1150 = vmatprep.subr.bf16.mxu0 0
        %1151 = vmatpush1.bf16.msra.mxu0 %v1132
        %1152 = vmatprep.subr.bf16.mxu0 0
        %1153 = vmatpush1.bf16.msra.mxu0 0
        %1154 = vmatprep.subr.bf16.mxu0 0
        %1155 = vmatpush1.bf16.msra.mxu0 0
        %1156 = vmatprep.subr.bf16.mxu0 0
        %1157 = vmatpush1.bf16.msra.mxu0 0
        %1158 = vmatprep.subr.bf16.mxu0 0
        %1159 = vmatpush1.bf16.msra.mxu0 0
        %1160 = vmatprep.subr.bf16.mxu0 0
        %1161 = vmatpush1.bf16.msra.mxu0 0
        %1162 = vmatprep.subr.bf16.mxu0 0
        %1163 = vmatpush1.bf16.msra.mxu0 0
        %1164 = vmatprep.subr.bf16.mxu0 0
        %1165 = vmatpush1.bf16.msra.mxu0 0
        %1166 = vmatprep.subr.bf16.mxu0 0
        %1167 = vmatpush1.bf16.msra.mxu0 0
        %1168 = vmatprep.subr.bf16.mxu0 0
        %1169 = vmatpush1.bf16.msra.mxu0 0
        %1170 = vmatprep.subr.bf16.mxu0 0
        %1171 = vmatpush1.bf16.msra.mxu0 0
        %1172 = vmatprep.subr.bf16.mxu0 0
        %1173 = vmatpush1.bf16.msra.mxu0 0
        %1174 = vmatprep.subr.bf16.mxu0 0
        %1175 = vmatpush1.bf16.msra.mxu0 0
        %1176 = vmatprep.mubr.bf16.mxu0 0
        %1177 = vmatmul.mubr.bf16.gmra.mrb[0].mxu0 %v1142
        %v1178 = vpop.f32.mrb[0].mxu0
        %v1179 = vadd.f32 %v1138, %v1178
        %v1180 = vpop.f32.mrb[0].mxu0
        %v1181 = vpop.f32.mrb[0].mxu0
        %v1182 = vpop.f32.mrb[0].mxu0
        %1183 = vdwg.mxu0
        %v1184 = vadd.f32 %v1053, %v1179
        %v1185 = vld [vmem:[%s14] sm:$0x1]
        %v1186 = vld [vmem:[%s15] sm:$0x1]
        %v1187 = vsel %vm643, %v1184, 0.0
        %1188 = vadd.xlane.f32.xlu0 %v1187
        %v1189 = vpop.xlane.xlu0 %1188
        %v1190 = vmul.f32 %v1189, %v647
        %v1191 = vsub.f32 %v1184, %v1190
        %v1192 = vmul.f32 %v1191, %v1191
        %v1193 = vsel %vm643, %v1192, 0.0
        %1194 = vadd.xlane.f32.xlu0 %v1193
        %v1195 = vpop.xlane.xlu0 %1194
        %v1196 = vmul.f32 %v1195, %v647
        %v1197 = vadd.f32 %v1196, 1e-12
        %v1198 = vrsqrt.pop %v1197
        %v1199 = vmul.f32 %v1191, %v1198
        %v1201 = vlaneseq
        %v1202 = vshrl.u32 %v1201, 7
        %v1203 = vsub.s32 0, %v1202
        %v1204 = vrot.slane %v1185, %v1203
        %v1206 = vmul.f32 %v1199, %v1204
        %v1208 = vlaneseq
        %v1209 = vshrl.u32 %v1208, 7
        %v1210 = vsub.s32 0, %v1209
        %v1211 = vrot.slane %v1186, %v1210
        %v1213 = vadd.f32 %v1206, %v1211
        %s1214 = scalar_lea.vmem %s4, 32
        %v1215 = vld [vmem:[%s1214] sm:$0xff]
        %v1216 = vld [vmem:[%s1214 + $0x8] sm:$0xff]
        %v1217 = vld [vmem:[%s1214 + $0x10] sm:$0xff]
        %v1218 = vld [vmem:[%s1214 + $0x18] sm:$0xff]
        %v1219 = vpack.c.bf16 %v1213, %v1213
        %v1220 = vpack.c.bf16 %v1216, %v1215
        %v1221 = vpack.c.bf16 %v1218, %v1217
        %s1222 = scalar_lea.vmem %s5, 1
        %v1223 = vld [vmem:[%s1222] sm:$0x1]
        %v1225 = vlaneseq
        %v1226 = vshrl.u32 %v1225, 7
        %v1227 = vsub.s32 0, %v1226
        %v1228 = vrot.slane %v1223, %v1227
        %v1231 = vsel %vm643, %v1219, 0
        %1233 = vmatprep.subr.bf16.mxu0 0
        %1234 = vmatpush1.bf16.msra.mxu0 %v1220
        %1235 = vmatprep.subr.bf16.mxu0 0
        %1236 = vmatpush1.bf16.msra.mxu0 %v1221
        %1237 = vmatprep.subr.bf16.mxu0 0
        %1238 = vmatpush1.bf16.msra.mxu0 0
        %1239 = vmatprep.subr.bf16.mxu0 0
        %1240 = vmatpush1.bf16.msra.mxu0 0
        %1241 = vmatprep.subr.bf16.mxu0 0
        %1242 = vmatpush1.bf16.msra.mxu0 0
        %1243 = vmatprep.subr.bf16.mxu0 0
        %1244 = vmatpush1.bf16.msra.mxu0 0
        %1245 = vmatprep.subr.bf16.mxu0 0
        %1246 = vmatpush1.bf16.msra.mxu0 0
        %1247 = vmatprep.subr.bf16.mxu0 0
        %1248 = vmatpush1.bf16.msra.mxu0 0
        %1249 = vmatprep.subr.bf16.mxu0 0
        %1250 = vmatpush1.bf16.msra.mxu0 0
        %1251 = vmatprep.subr.bf16.mxu0 0
        %1252 = vmatpush1.bf16.msra.mxu0 0
        %1253 = vmatprep.subr.bf16.mxu0 0
        %1254 = vmatpush1.bf16.msra.mxu0 0
        %1255 = vmatprep.subr.bf16.mxu0 0
        %1256 = vmatpush1.bf16.msra.mxu0 0
        %1257 = vmatprep.subr.bf16.mxu0 0
        %1258 = vmatpush1.bf16.msra.mxu0 0
        %1259 = vmatprep.subr.bf16.mxu0 0
        %1260 = vmatpush1.bf16.msra.mxu0 0
        %1261 = vmatprep.subr.bf16.mxu0 0
        %1262 = vmatpush1.bf16.msra.mxu0 0
        %1263 = vmatprep.subr.bf16.mxu0 0
        %1264 = vmatpush1.bf16.msra.mxu0 0
        %1265 = vmatprep.mubr.bf16.mxu0 0
        %1266 = vmatmul.mubr.bf16.gmra.mrb[0].mxu0 %v1231
        %v1267 = vpop.f32.mrb[0].mxu0
        %v1268 = vadd.f32 %v1228, %v1267
        %v1269 = vpop.f32.mrb[0].mxu0
        %v1270 = vpop.f32.mrb[0].mxu0
        %v1271 = vpop.f32.mrb[0].mxu0
        %1272 = vdwg.mxu0
        %v1273 = vpack.c.bf16 %v1268, %v1268
        %1275 = vrot.lane.b32.xlu0 %v1273, 96
        %v1276 = vpop.permute.xlu0 %1275
        %v1278 = vsel %vm733, %v1273, 0
        %v1281 = vsel %vm733, %v1276, 0
        %1283 = vmatprep.subr.bf16.mxu0 0
        %1284 = vmatpush1.bf16.xpose.msra.mxu0 %v1281
        %1285 = vmatprep.subr.bf16.mxu0 0
        %1286 = vmatpush1.bf16.xpose.msra.mxu0 0
        %1287 = vmatprep.subr.bf16.mxu0 0
        %1288 = vmatpush1.bf16.xpose.msra.mxu0 0
        %1289 = vmatprep.subr.bf16.mxu0 0
        %1290 = vmatpush1.bf16.xpose.msra.mxu0 0
        %1291 = vmatprep.subr.bf16.mxu0 0
        %1292 = vmatpush1.bf16.xpose.msra.mxu0 0
        %1293 = vmatprep.subr.bf16.mxu0 0
        %1294 = vmatpush1.bf16.xpose.msra.mxu0 0
        %1295 = vmatprep.subr.bf16.mxu0 0
        %1296 = vmatpush1.bf16.xpose.msra.mxu0 0
        %1297 = vmatprep.subr.bf16.mxu0 0
        %1298 = vmatpush1.bf16.xpose.msra.mxu0 0
        %1299 = vmatprep.subr.bf16.mxu0 0
        %1300 = vmatpush1.bf16.xpose.msra.mxu0 0
        %1301 = vmatprep.subr.bf16.mxu0 0
        %1302 = vmatpush1.bf16.xpose.msra.mxu0 0
        %1303 = vmatprep.subr.bf16.mxu0 0
        %1304 = vmatpush1.bf16.xpose.msra.mxu0 0
        %1305 = vmatprep.subr.bf16.mxu0 0
        %1306 = vmatpush1.bf16.xpose.msra.mxu0 0
        %1307 = vmatprep.subr.bf16.mxu0 0
        %1308 = vmatpush1.bf16.xpose.msra.mxu0 0
        %1309 = vmatprep.subr.bf16.mxu0 0
        %1310 = vmatpush1.bf16.xpose.msra.mxu0 0
        %1311 = vmatprep.subr.bf16.mxu0 0
        %1312 = vmatpush1.bf16.xpose.msra.mxu0 0
        %1313 = vmatprep.subr.bf16.mxu0 0
        %1314 = vmatpush1.bf16.xpose.msra.mxu0 0
        %1315 = vmatprep.mubr.bf16.mxu0 0
        %1316 = vmatmul.mubr.bf16.gmra.mrb[0].mxu0 %v1278
        %v1317 = vpop.f32.mrb[0].mxu0
        %v1318 = vadd.f32 0.0, %v1317
        %v1319 = vpop.f32.mrb[0].mxu0
        %v1320 = vpop.f32.mrb[0].mxu0
        %v1321 = vpop.f32.mrb[0].mxu0
        %1322 = vdwg.mxu0
        %v1323 = vmul.f32 %v1318, 0.25
        %v1324 = vadd.f32 %v1323, %v785
        %v1325 = vsel %vm788, %v1324, -inf
        %1326 = vmax.xlane.f32.xlu0 %v1325
        %v1327 = vpop.xlane.xlu0 %1326
        %v1328 = vsub.f32 %v1324, %v1327
        %v1329 = vmul.f32 %v1328, 1.442695
        %v1330 = vpow.pop %v1329
        %v1331 = vsel %vm788, %v1330, 0.0
        %1332 = vadd.xlane.f32.xlu0 %v1331
        %v1333 = vpop.xlane.xlu0 %1332
        %v1334 = vrcp.pop %v1333
        %v1335 = vmul.f32 %v1330, %v1334
        %v1336 = vpack.c.bf16 %v1335, %v1335
        %1337 = vrot.lane.b32.xlu0 %v1273, 64
        %v1338 = vpop.permute.xlu0 %1337
        %v1340 = vsel %vm788, %v1336, 0
        %v1343 = vsel %vm806, %v1338, 0
        %1345 = vmatprep.subr.bf16.mxu0 0
        %1346 = vmatpush1.bf16.msra.mxu0 %v1343
        %1347 = vmatprep.subr.bf16.mxu0 0
        %1348 = vmatpush1.bf16.msra.mxu0 0
        %1349 = vmatprep.subr.bf16.mxu0 0
        %1350 = vmatpush1.bf16.msra.mxu0 0
        %1351 = vmatprep.subr.bf16.mxu0 0
        %1352 = vmatpush1.bf16.msra.mxu0 0
        %1353 = vmatprep.subr.bf16.mxu0 0
        %1354 = vmatpush1.bf16.msra.mxu0 0
        %1355 = vmatprep.subr.bf16.mxu0 0
        %1356 = vmatpush1.bf16.msra.mxu0 0
        %1357 = vmatprep.subr.bf16.mxu0 0
        %1358 = vmatpush1.bf16.msra.mxu0 0
        %1359 = vmatprep.subr.bf16.mxu0 0
        %1360 = vmatpush1.bf16.msra.mxu0 0
        %1361 = vmatprep.subr.bf16.mxu0 0
        %1362 = vmatpush1.bf16.msra.mxu0 0
        %1363 = vmatprep.subr.bf16.mxu0 0
        %1364 = vmatpush1.bf16.msra.mxu0 0
        %1365 = vmatprep.subr.bf16.mxu0 0
        %1366 = vmatpush1.bf16.msra.mxu0 0
        %1367 = vmatprep.subr.bf16.mxu0 0
        %1368 = vmatpush1.bf16.msra.mxu0 0
        %1369 = vmatprep.subr.bf16.mxu0 0
        %1370 = vmatpush1.bf16.msra.mxu0 0
        %1371 = vmatprep.subr.bf16.mxu0 0
        %1372 = vmatpush1.bf16.msra.mxu0 0
        %1373 = vmatprep.subr.bf16.mxu0 0
        %1374 = vmatpush1.bf16.msra.mxu0 0
        %1375 = vmatprep.subr.bf16.mxu0 0
        %1376 = vmatpush1.bf16.msra.mxu0 0
        %1377 = vmatprep.mubr.bf16.mxu0 0
        %1378 = vmatmul.mubr.bf16.gmra.mrb[0].mxu0 %v1340
        %v1379 = vpop.f32.mrb[0].mxu0
        %v1380 = vadd.f32 0.0, %v1379
        %v1381 = vpop.f32.mrb[0].mxu0
        %v1382 = vpop.f32.mrb[0].mxu0
        %v1383 = vpop.f32.mrb[0].mxu0
        %1384 = vdwg.mxu0
        %1385 = vrot.lane.b32.xlu0 %v1273, 112
        %v1386 = vpop.permute.xlu0 %1385
        %1387 = vrot.lane.b32.xlu0 %v1273, 80
        %v1388 = vpop.permute.xlu0 %1387
        %v1390 = vsel %vm733, %v1386, 0
        %v1393 = vsel %vm733, %v1388, 0
        %1395 = vmatprep.subr.bf16.mxu0 0
        %1396 = vmatpush1.bf16.xpose.msra.mxu0 %v1393
        %1397 = vmatprep.subr.bf16.mxu0 0
        %1398 = vmatpush1.bf16.xpose.msra.mxu0 0
        %1399 = vmatprep.subr.bf16.mxu0 0
        %1400 = vmatpush1.bf16.xpose.msra.mxu0 0
        %1401 = vmatprep.subr.bf16.mxu0 0
        %1402 = vmatpush1.bf16.xpose.msra.mxu0 0
        %1403 = vmatprep.subr.bf16.mxu0 0
        %1404 = vmatpush1.bf16.xpose.msra.mxu0 0
        %1405 = vmatprep.subr.bf16.mxu0 0
        %1406 = vmatpush1.bf16.xpose.msra.mxu0 0
        %1407 = vmatprep.subr.bf16.mxu0 0
        %1408 = vmatpush1.bf16.xpose.msra.mxu0 0
        %1409 = vmatprep.subr.bf16.mxu0 0
        %1410 = vmatpush1.bf16.xpose.msra.mxu0 0
        %1411 = vmatprep.subr.bf16.mxu0 0
        %1412 = vmatpush1.bf16.xpose.msra.mxu0 0
        %1413 = vmatprep.subr.bf16.mxu0 0
        %1414 = vmatpush1.bf16.xpose.msra.mxu0 0
        %1415 = vmatprep.subr.bf16.mxu0 0
        %1416 = vmatpush1.bf16.xpose.msra.mxu0 0
        %1417 = vmatprep.subr.bf16.mxu0 0
        %1418 = vmatpush1.bf16.xpose.msra.mxu0 0
        %1419 = vmatprep.subr.bf16.mxu0 0
        %1420 = vmatpush1.bf16.xpose.msra.mxu0 0
        %1421 = vmatprep.subr.bf16.mxu0 0
        %1422 = vmatpush1.bf16.xpose.msra.mxu0 0
        %1423 = vmatprep.subr.bf16.mxu0 0
        %1424 = vmatpush1.bf16.xpose.msra.mxu0 0
        %1425 = vmatprep.subr.bf16.mxu0 0
        %1426 = vmatpush1.bf16.xpose.msra.mxu0 0
        %1427 = vmatprep.mubr.bf16.mxu0 0
        %1428 = vmatmul.mubr.bf16.gmra.mrb[0].mxu0 %v1390
        %v1429 = vpop.f32.mrb[0].mxu0
        %v1430 = vadd.f32 0.0, %v1429
        %v1431 = vpop.f32.mrb[0].mxu0
        %v1432 = vpop.f32.mrb[0].mxu0
        %v1433 = vpop.f32.mrb[0].mxu0
        %1434 = vdwg.mxu0
        %v1435 = vmul.f32 %v1430, 0.25
        %v1436 = vadd.f32 %v1435, %v785
        %v1437 = vsel %vm788, %v1436, -inf
        %1438 = vmax.xlane.f32.xlu0 %v1437
        %v1439 = vpop.xlane.xlu0 %1438
        %v1440 = vsub.f32 %v1436, %v1439
        %v1441 = vmul.f32 %v1440, 1.442695
        %v1442 = vpow.pop %v1441
        %v1443 = vsel %vm788, %v1442, 0.0
        %1444 = vadd.xlane.f32.xlu0 %v1443
        %v1445 = vpop.xlane.xlu0 %1444
        %v1446 = vrcp.pop %v1445
        %v1447 = vmul.f32 %v1442, %v1446
        %v1448 = vpack.c.bf16 %v1447, %v1447
        %1449 = vrot.lane.b32.xlu0 %v1273, 48
        %v1450 = vpop.permute.xlu0 %1449
        %v1452 = vsel %vm788, %v1448, 0
        %v1455 = vsel %vm806, %v1450, 0
        %1457 = vmatprep.subr.bf16.mxu0 0
        %1458 = vmatpush1.bf16.msra.mxu0 %v1455
        %1459 = vmatprep.subr.bf16.mxu0 0
        %1460 = vmatpush1.bf16.msra.mxu0 0
        %1461 = vmatprep.subr.bf16.mxu0 0
        %1462 = vmatpush1.bf16.msra.mxu0 0
        %1463 = vmatprep.subr.bf16.mxu0 0
        %1464 = vmatpush1.bf16.msra.mxu0 0
        %1465 = vmatprep.subr.bf16.mxu0 0
        %1466 = vmatpush1.bf16.msra.mxu0 0
        %1467 = vmatprep.subr.bf16.mxu0 0
        %1468 = vmatpush1.bf16.msra.mxu0 0
        %1469 = vmatprep.subr.bf16.mxu0 0
        %1470 = vmatpush1.bf16.msra.mxu0 0
        %1471 = vmatprep.subr.bf16.mxu0 0
        %1472 = vmatpush1.bf16.msra.mxu0 0
        %1473 = vmatprep.subr.bf16.mxu0 0
        %1474 = vmatpush1.bf16.msra.mxu0 0
        %1475 = vmatprep.subr.bf16.mxu0 0
        %1476 = vmatpush1.bf16.msra.mxu0 0
        %1477 = vmatprep.subr.bf16.mxu0 0
        %1478 = vmatpush1.bf16.msra.mxu0 0
        %1479 = vmatprep.subr.bf16.mxu0 0
        %1480 = vmatpush1.bf16.msra.mxu0 0
        %1481 = vmatprep.subr.bf16.mxu0 0
        %1482 = vmatpush1.bf16.msra.mxu0 0
        %1483 = vmatprep.subr.bf16.mxu0 0
        %1484 = vmatpush1.bf16.msra.mxu0 0
        %1485 = vmatprep.subr.bf16.mxu0 0
        %1486 = vmatpush1.bf16.msra.mxu0 0
        %1487 = vmatprep.subr.bf16.mxu0 0
        %1488 = vmatpush1.bf16.msra.mxu0 0
        %1489 = vmatprep.mubr.bf16.mxu0 0
        %1490 = vmatmul.mubr.bf16.gmra.mrb[0].mxu0 %v1452
        %v1491 = vpop.f32.mrb[0].mxu0
        %v1492 = vadd.f32 0.0, %v1491
        %v1493 = vpop.f32.mrb[0].mxu0
        %v1494 = vpop.f32.mrb[0].mxu0
        %v1495 = vpop.f32.mrb[0].mxu0
        %1496 = vdwg.mxu0
        %1498 = vrot.lane.b32.xlu0 %v1492, 16
        %v1499 = vpop.permute.xlu0 %1498
        %v1501 = vsel %vm733, %v1380, %v1499
        %s1502 = scalar_lea.vmem %s6, 32
        %v1503 = vld [vmem:[%s1502] sm:$0xff]
        %v1504 = vld [vmem:[%s1502 + $0x8] sm:$0xff]
        %v1505 = vld [vmem:[%s1502 + $0x10] sm:$0xff]
        %v1506 = vld [vmem:[%s1502 + $0x18] sm:$0xff]
        %v1507 = vpack.c.bf16 %v1501, %v1501
        %v1508 = vpack.c.bf16 %v1504, %v1503
        %v1509 = vpack.c.bf16 %v1506, %v1505
        %s1510 = scalar_lea.vmem %s7, 1
        %v1511 = vld [vmem:[%s1510] sm:$0x1]
        %v1513 = vlaneseq
        %v1514 = vshrl.u32 %v1513, 7
        %v1515 = vsub.s32 0, %v1514
        %v1516 = vrot.slane %v1511, %v1515
        %v1519 = vsel %vm643, %v1507, 0
        %1521 = vmatprep.subr.bf16.mxu0 0
        %1522 = vmatpush1.bf16.msra.mxu0 %v1508
        %1523 = vmatprep.subr.bf16.mxu0 0
        %1524 = vmatpush1.bf16.msra.mxu0 %v1509
        %1525 = vmatprep.subr.bf16.mxu0 0
        %1526 = vmatpush1.bf16.msra.mxu0 0
        %1527 = vmatprep.subr.bf16.mxu0 0
        %1528 = vmatpush1.bf16.msra.mxu0 0
        %1529 = vmatprep.subr.bf16.mxu0 0
        %1530 = vmatpush1.bf16.msra.mxu0 0
        %1531 = vmatprep.subr.bf16.mxu0 0
        %1532 = vmatpush1.bf16.msra.mxu0 0
        %1533 = vmatprep.subr.bf16.mxu0 0
        %1534 = vmatpush1.bf16.msra.mxu0 0
        %1535 = vmatprep.subr.bf16.mxu0 0
        %1536 = vmatpush1.bf16.msra.mxu0 0
        %1537 = vmatprep.subr.bf16.mxu0 0
        %1538 = vmatpush1.bf16.msra.mxu0 0
        %1539 = vmatprep.subr.bf16.mxu0 0
        %1540 = vmatpush1.bf16.msra.mxu0 0
        %1541 = vmatprep.subr.bf16.mxu0 0
        %1542 = vmatpush1.bf16.msra.mxu0 0
        %1543 = vmatprep.subr.bf16.mxu0 0
        %1544 = vmatpush1.bf16.msra.mxu0 0
        %1545 = vmatprep.subr.bf16.mxu0 0
        %1546 = vmatpush1.bf16.msra.mxu0 0
        %1547 = vmatprep.subr.bf16.mxu0 0
        %1548 = vmatpush1.bf16.msra.mxu0 0
        %1549 = vmatprep.subr.bf16.mxu0 0
        %1550 = vmatpush1.bf16.msra.mxu0 0
        %1551 = vmatprep.subr.bf16.mxu0 0
        %1552 = vmatpush1.bf16.msra.mxu0 0
        %1553 = vmatprep.mubr.bf16.mxu0 0
        %1554 = vmatmul.mubr.bf16.gmra.mrb[0].mxu0 %v1519
        %v1555 = vpop.f32.mrb[0].mxu0
        %v1556 = vadd.f32 %v1516, %v1555
        %v1557 = vpop.f32.mrb[0].mxu0
        %v1558 = vpop.f32.mrb[0].mxu0
        %v1559 = vpop.f32.mrb[0].mxu0
        %1560 = vdwg.mxu0
        %v1561 = vadd.f32 %v1213, %v1556
        %s1562 = scalar_lea.vmem %s8, 1
        %v1563 = vld [vmem:[%s1562] sm:$0x1]
        %s1564 = scalar_lea.vmem %s9, 1
        %v1565 = vld [vmem:[%s1564] sm:$0x1]
        %v1566 = vsel %vm643, %v1561, 0.0
        %1567 = vadd.xlane.f32.xlu0 %v1566
        %v1568 = vpop.xlane.xlu0 %1567
        %v1569 = vmul.f32 %v1568, %v647
        %v1570 = vsub.f32 %v1561, %v1569
        %v1571 = vmul.f32 %v1570, %v1570
        %v1572 = vsel %vm643, %v1571, 0.0
        %1573 = vadd.xlane.f32.xlu0 %v1572
        %v1574 = vpop.xlane.xlu0 %1573
        %v1575 = vmul.f32 %v1574, %v647
        %v1576 = vadd.f32 %v1575, 1e-12
        %v1577 = vrsqrt.pop %v1576
        %v1578 = vmul.f32 %v1570, %v1577
        %v1580 = vlaneseq
        %v1581 = vshrl.u32 %v1580, 7
        %v1582 = vsub.s32 0, %v1581
        %v1583 = vrot.slane %v1563, %v1582
        %v1585 = vmul.f32 %v1578, %v1583
        %v1587 = vlaneseq
        %v1588 = vshrl.u32 %v1587, 7
        %v1589 = vsub.s32 0, %v1588
        %v1590 = vrot.slane %v1565, %v1589
        %v1592 = vadd.f32 %v1585, %v1590
        %s1593 = scalar_lea.vmem %s10, 32
        %v1594 = vld [vmem:[%s1593] sm:$0xff]
        %v1595 = vld [vmem:[%s1593 + $0x8] sm:$0xff]
        %v1596 = vld [vmem:[%s1593 + $0x10] sm:$0xff]
        %v1597 = vld [vmem:[%s1593 + $0x18] sm:$0xff]
        %v1598 = vpack.c.bf16 %v1592, %v1592
        %v1599 = vpack.c.bf16 %v1595, %v1594
        %v1600 = vpack.c.bf16 %v1597, %v1596
        %s1601 = scalar_lea.vmem %s11, 1
        %v1602 = vld [vmem:[%s1601] sm:$0x1]
        %v1604 = vlaneseq
        %v1605 = vshrl.u32 %v1604, 7
        %v1606 = vsub.s32 0, %v1605
        %v1607 = vrot.slane %v1602, %v1606
        %v1610 = vsel %vm643, %v1598, 0
        %1612 = vmatprep.subr.bf16.mxu0 0
        %1613 = vmatpush1.bf16.msra.mxu0 %v1599
        %1614 = vmatprep.subr.bf16.mxu0 0
        %1615 = vmatpush1.bf16.msra.mxu0 %v1600
        %1616 = vmatprep.subr.bf16.mxu0 0
        %1617 = vmatpush1.bf16.msra.mxu0 0
        %1618 = vmatprep.subr.bf16.mxu0 0
        %1619 = vmatpush1.bf16.msra.mxu0 0
        %1620 = vmatprep.subr.bf16.mxu0 0
        %1621 = vmatpush1.bf16.msra.mxu0 0
        %1622 = vmatprep.subr.bf16.mxu0 0
        %1623 = vmatpush1.bf16.msra.mxu0 0
        %1624 = vmatprep.subr.bf16.mxu0 0
        %1625 = vmatpush1.bf16.msra.mxu0 0
        %1626 = vmatprep.subr.bf16.mxu0 0
        %1627 = vmatpush1.bf16.msra.mxu0 0
        %1628 = vmatprep.subr.bf16.mxu0 0
        %1629 = vmatpush1.bf16.msra.mxu0 0
        %1630 = vmatprep.subr.bf16.mxu0 0
        %1631 = vmatpush1.bf16.msra.mxu0 0
        %1632 = vmatprep.subr.bf16.mxu0 0
        %1633 = vmatpush1.bf16.msra.mxu0 0
        %1634 = vmatprep.subr.bf16.mxu0 0
        %1635 = vmatpush1.bf16.msra.mxu0 0
        %1636 = vmatprep.subr.bf16.mxu0 0
        %1637 = vmatpush1.bf16.msra.mxu0 0
        %1638 = vmatprep.subr.bf16.mxu0 0
        %1639 = vmatpush1.bf16.msra.mxu0 0
        %1640 = vmatprep.subr.bf16.mxu0 0
        %1641 = vmatpush1.bf16.msra.mxu0 0
        %1642 = vmatprep.subr.bf16.mxu0 0
        %1643 = vmatpush1.bf16.msra.mxu0 0
        %1644 = vmatprep.mubr.bf16.mxu0 0
        %1645 = vmatmul.mubr.bf16.gmra.mrb[0].mxu0 %v1610
        %v1646 = vpop.f32.mrb[0].mxu0
        %v1647 = vadd.f32 %v1607, %v1646
        %v1648 = vpop.f32.mrb[0].mxu0
        %v1649 = vpop.f32.mrb[0].mxu0
        %v1650 = vpop.f32.mrb[0].mxu0
        %1651 = vdwg.mxu0
        %v1652 = vmul.f32 %v1647, 0.5
        %v1653 = vmul.f32 %v1647, 0.044715
        %v1654 = vmul.f32 %v1653, %v1647
        %v1655 = vmul.f32 %v1654, %v1647
        %v1656 = vadd.f32 %v1647, %v1655
        %v1657 = vmul.f32 %v1656, 0.7978846
        %v1658 = vtanh.pop %v1657
        %v1659 = vadd.f32 %v1658, 1.0
        %v1660 = vmul.f32 %v1652, %v1659
        %s1661 = scalar_lea.vmem %s12, 64
        %v1662 = vld [vmem:[%s1661] sm:$0xff]
        %v1663 = vld [vmem:[%s1661 + $0x8] sm:$0xff]
        %v1664 = vld [vmem:[%s1661 + $0x10] sm:$0xff]
        %v1665 = vld [vmem:[%s1661 + $0x18] sm:$0xff]
        %v1666 = vld [vmem:[%s1661 + $0x20] sm:$0xff]
        %v1667 = vld [vmem:[%s1661 + $0x28] sm:$0xff]
        %v1668 = vld [vmem:[%s1661 + $0x30] sm:$0xff]
        %v1669 = vld [vmem:[%s1661 + $0x38] sm:$0xff]
        %v1670 = vpack.c.bf16 %v1660, %v1660
        %v1671 = vpack.c.bf16 %v1663, %v1662
        %v1672 = vpack.c.bf16 %v1665, %v1664
        %v1673 = vpack.c.bf16 %v1667, %v1666
        %v1674 = vpack.c.bf16 %v1669, %v1668
        %s1675 = scalar_lea.vmem %s13, 1
        %v1676 = vld [vmem:[%s1675] sm:$0x1]
        %v1678 = vlaneseq
        %v1679 = vshrl.u32 %v1678, 7
        %v1680 = vsub.s32 0, %v1679
        %v1681 = vrot.slane %v1676, %v1680
        %v1684 = vsel %vm1140, %v1670, 0
        %1686 = vmatprep.subr.bf16.mxu0 0
        %1687 = vmatpush1.bf16.msra.mxu0 %v1671
        %1688 = vmatprep.subr.bf16.mxu0 0
        %1689 = vmatpush1.bf16.msra.mxu0 %v1672
        %1690 = vmatprep.subr.bf16.mxu0 0
        %1691 = vmatpush1.bf16.msra.mxu0 %v1673
        %1692 = vmatprep.subr.bf16.mxu0 0
        %1693 = vmatpush1.bf16.msra.mxu0 %v1674
        %1694 = vmatprep.subr.bf16.mxu0 0
        %1695 = vmatpush1.bf16.msra.mxu0 0
        %1696 = vmatprep.subr.bf16.mxu0 0
        %1697 = vmatpush1.bf16.msra.mxu0 0
        %1698 = vmatprep.subr.bf16.mxu0 0
        %1699 = vmatpush1.bf16.msra.mxu0 0
        %1700 = vmatprep.subr.bf16.mxu0 0
        %1701 = vmatpush1.bf16.msra.mxu0 0
        %1702 = vmatprep.subr.bf16.mxu0 0
        %1703 = vmatpush1.bf16.msra.mxu0 0
        %1704 = vmatprep.subr.bf16.mxu0 0
        %1705 = vmatpush1.bf16.msra.mxu0 0
        %1706 = vmatprep.subr.bf16.mxu0 0
        %1707 = vmatpush1.bf16.msra.mxu0 0
        %1708 = vmatprep.subr.bf16.mxu0 0
        %1709 = vmatpush1.bf16.msra.mxu0 0
        %1710 = vmatprep.subr.bf16.mxu0 0
        %1711 = vmatpush1.bf16.msra.mxu0 0
        %1712 = vmatprep.subr.bf16.mxu0 0
        %1713 = vmatpush1.bf16.msra.mxu0 0
        %1714 = vmatprep.subr.bf16.mxu0 0
        %1715 = vmatpush1.bf16.msra.mxu0 0
        %1716 = vmatprep.subr.bf16.mxu0 0
        %1717 = vmatpush1.bf16.msra.mxu0 0
        %1718 = vmatprep.mubr.bf16.mxu0 0
        %1719 = vmatmul.mubr.bf16.gmra.mrb[0].mxu0 %v1684
        %v1720 = vpop.f32.mrb[0].mxu0
        %v1721 = vadd.f32 %v1681, %v1720
        %v1722 = vpop.f32.mrb[0].mxu0
        %v1723 = vpop.f32.mrb[0].mxu0
        %v1724 = vpop.f32.mrb[0].mxu0
        %1725 = vdwg.mxu0
        %v1726 = vadd.f32 %v1592, %v1721
        %s1727 = scalar_lea.vmem %s14, 1
        %v1728 = vld [vmem:[%s1727] sm:$0x1]
        %s1729 = scalar_lea.vmem %s15, 1
        %v1730 = vld [vmem:[%s1729] sm:$0x1]
        %v1731 = vsel %vm643, %v1726, 0.0
        %1732 = vadd.xlane.f32.xlu0 %v1731
        %v1733 = vpop.xlane.xlu0 %1732
        %v1734 = vmul.f32 %v1733, %v647
        %v1735 = vsub.f32 %v1726, %v1734
        %v1736 = vmul.f32 %v1735, %v1735
        %v1737 = vsel %vm643, %v1736, 0.0
        %1738 = vadd.xlane.f32.xlu0 %v1737
        %v1739 = vpop.xlane.xlu0 %1738
        %v1740 = vmul.f32 %v1739, %v647
        %v1741 = vadd.f32 %v1740, 1e-12
        %v1742 = vrsqrt.pop %v1741
        %v1743 = vmul.f32 %v1735, %v1742
        %v1745 = vlaneseq
        %v1746 = vshrl.u32 %v1745, 7
        %v1747 = vsub.s32 0, %v1746
        %v1748 = vrot.slane %v1728, %v1747
        %v1750 = vmul.f32 %v1743, %v1748
        %v1752 = vlaneseq
        %v1753 = vshrl.u32 %v1752, 7
        %v1754 = vsub.s32 0, %v1753
        %v1755 = vrot.slane %v1730, %v1754
        %v1757 = vadd.f32 %v1750, %v1755
        %v1758 = vld [vmem:[%s16] sm:$0xff]
        %v1759 = vld [vmem:[%s16 + $0x8] sm:$0xff]
        %v1760 = vld [vmem:[%s16 + $0x10] sm:$0xff]
        %v1761 = vld [vmem:[%s16 + $0x18] sm:$0xff]
        %v1762 = vpack.c.bf16 %v1757, %v1757
        %v1763 = vpack.c.bf16 %v1759, %v1758
        %v1764 = vpack.c.bf16 %v1761, %v1760
        %v1765 = vld [vmem:[%s17] sm:$0x1]
        %v1767 = vsel %vm643, %v1762, 0
        %1769 = vmatprep.subr.bf16.mxu0 0
        %1770 = vmatpush1.bf16.msra.mxu0 %v1763
        %1771 = vmatprep.subr.bf16.mxu0 0
        %1772 = vmatpush1.bf16.msra.mxu0 %v1764
        %1773 = vmatprep.subr.bf16.mxu0 0
        %1774 = vmatpush1.bf16.msra.mxu0 0
        %1775 = vmatprep.subr.bf16.mxu0 0
        %1776 = vmatpush1.bf16.msra.mxu0 0
        %1777 = vmatprep.subr.bf16.mxu0 0
        %1778 = vmatpush1.bf16.msra.mxu0 0
        %1779 = vmatprep.subr.bf16.mxu0 0
        %1780 = vmatpush1.bf16.msra.mxu0 0
        %1781 = vmatprep.subr.bf16.mxu0 0
        %1782 = vmatpush1.bf16.msra.mxu0 0
        %1783 = vmatprep.subr.bf16.mxu0 0
        %1784 = vmatpush1.bf16.msra.mxu0 0
        %1785 = vmatprep.subr.bf16.mxu0 0
        %1786 = vmatpush1.bf16.msra.mxu0 0
        %1787 = vmatprep.subr.bf16.mxu0 0
        %1788 = vmatpush1.bf16.msra.mxu0 0
        %1789 = vmatprep.subr.bf16.mxu0 0
        %1790 = vmatpush1.bf16.msra.mxu0 0
        %1791 = vmatprep.subr.bf16.mxu0 0
        %1792 = vmatpush1.bf16.msra.mxu0 0
        %1793 = vmatprep.subr.bf16.mxu0 0
        %1794 = vmatpush1.bf16.msra.mxu0 0
        %1795 = vmatprep.subr.bf16.mxu0 0
        %1796 = vmatpush1.bf16.msra.mxu0 0
        %1797 = vmatprep.subr.bf16.mxu0 0
        %1798 = vmatpush1.bf16.msra.mxu0 0
        %1799 = vmatprep.subr.bf16.mxu0 0
        %1800 = vmatpush1.bf16.msra.mxu0 0
        %1801 = vmatprep.mubr.bf16.mxu0 0
        %1802 = vmatmul.mubr.bf16.gmra.mrb[0].mxu0 %v1767
        %v1803 = vpop.f32.mrb[0].mxu0
        %v1804 = vadd.f32 %v1765, %v1803
        %v1805 = vpop.f32.mrb[0].mxu0
        %v1806 = vpop.f32.mrb[0].mxu0
        %v1807 = vpop.f32.mrb[0].mxu0
        %1808 = vdwg.mxu0
        %v1809 = vtanh.pop %v1804
        %v1810 = vld [vmem:[%s18] sm:$0xff]
        %v1811 = vld [vmem:[%s18 + $0x8] sm:$0xff]
        %v1812 = vld [vmem:[%s18 + $0x10] sm:$0xff]
        %v1813 = vld [vmem:[%s18 + $0x18] sm:$0xff]
        %v1814 = vpack.c.bf16 %v1809, %v1809
        %v1815 = vpack.c.bf16 %v1811, %v1810
        %v1816 = vpack.c.bf16 %v1813, %v1812
        %v1817 = vld [vmem:[%s19] sm:$0x1]
        %v1819 = vsel %vm643, %v1814, 0
        %1821 = vmatprep.subr.bf16.mxu0 0
        %1822 = vmatpush1.bf16.msra.mxu0 %v1815
        %1823 = vmatprep.subr.bf16.mxu0 0
        %1824 = vmatpush1.bf16.msra.mxu0 %v1816
        %1825 = vmatprep.subr.bf16.mxu0 0
        %1826 = vmatpush1.bf16.msra.mxu0 0
        %1827 = vmatprep.subr.bf16.mxu0 0
        %1828 = vmatpush1.bf16.msra.mxu0 0
        %1829 = vmatprep.subr.bf16.mxu0 0
        %1830 = vmatpush1.bf16.msra.mxu0 0
        %1831 = vmatprep.subr.bf16.mxu0 0
        %1832 = vmatpush1.bf16.msra.mxu0 0
        %1833 = vmatprep.subr.bf16.mxu0 0
        %1834 = vmatpush1.bf16.msra.mxu0 0
        %1835 = vmatprep.subr.bf16.mxu0 0
        %1836 = vmatpush1.bf16.msra.mxu0 0
        %1837 = vmatprep.subr.bf16.mxu0 0
        %1838 = vmatpush1.bf16.msra.mxu0 0
        %1839 = vmatprep.subr.bf16.mxu0 0
        %1840 = vmatpush1.bf16.msra.mxu0 0
        %1841 = vmatprep.subr.bf16.mxu0 0
        %1842 = vmatpush1.bf16.msra.mxu0 0
        %1843 = vmatprep.subr.bf16.mxu0 0
        %1844 = vmatpush1.bf16.msra.mxu0 0
        %1845 = vmatprep.subr.bf16.mxu0 0
        %1846 = vmatpush1.bf16.msra.mxu0 0
        %1847 = vmatprep.subr.bf16.mxu0 0
        %1848 = vmatpush1.bf16.msra.mxu0 0
        %1849 = vmatprep.subr.bf16.mxu0 0
        %1850 = vmatpush1.bf16.msra.mxu0 0
        %1851 = vmatprep.subr.bf16.mxu0 0
        %1852 = vmatpush1.bf16.msra.mxu0 0
        %1853 = vmatprep.mubr.bf16.mxu0 0
        %1854 = vmatmul.mubr.bf16.gmra.mrb[0].mxu0 %v1819
        %v1855 = vpop.f32.mrb[0].mxu0
        %v1856 = vadd.f32 %v1817, %v1855
        %v1857 = vpop.f32.mrb[0].mxu0
        %v1858 = vpop.f32.mrb[0].mxu0
        %v1859 = vpop.f32.mrb[0].mxu0
        %1860 = vdwg.mxu0
        %vm1861 = vcmask 16384
        %1862 = vst.msk [vmem:[%s630] sm:$0x1] %vm1861, %v1856
        %s1863 = sand.u32 %s472, 1
        %s1864 = scalar_lea.sflag [#allocation3], %s1863
        %s1865 = sand.u32 %s472, 1
        %s1866 = scalar_lea.vmem [#allocation2], %s1865
        // Predicated region
        $region101: #{bert_wrapper_forward.1} parent=99 // pred_check
          %p1867 = pneg %p482
        $region102: #{bert_wrapper_forward.1} parent=99 // pred_check_branch
          %1869 = sbr.rel (%p1867) target = $region104
        $region103: #{bert_wrapper_forward.1} parent=99 // pred_region
          %s1871 = ssub.s32 16, 16
          %1872 = vsyncadd %s1864, %s1871
          %s1873 = smul.addr %s34, 16
          %s1874 = scalar_lea.hbm %s20, %s1873
          %s1876 = sshll.u32 %s1866, 4
          %s1877 = int_to_ptr.vmem [resolvable:$true] %s1876
          %1879 = dma.vmem_to_hbm [thread:$0]  %s1877, 16, %s1874, %s1864
        $region104: #{bert_wrapper_forward.1} parent=99 // pred_fallthru
          _
      $region100: #{bert_wrapper_forward.1} parent=5 // pred_fallthru
        _
      %p1880 = scmp.le.s32.totalorder 2, %s29
      // Predicated region
      $region105: #{bert_wrapper_forward.1} parent=5 // pred_check
        %p1881 = pneg %p1880
      $region106: #{bert_wrapper_forward.1} parent=5 // pred_check_branch
        %1883 = sbr.rel (%p1881) target = $region108
      $region107: #{bert_wrapper_forward.1} parent=5 // pred_region
        %s1884 = ssub.s32 %s29, 2
        // Predicated region
        $region109: #{bert_wrapper_forward.1} parent=107 // pred_check
          %p1885 = pneg %p488
        $region110: #{bert_wrapper_forward.1} parent=107 // pred_check_branch
          %1887 = sbr.rel (%p1885) target = $region112
        $region111: #{bert_wrapper_forward.1} parent=107 // pred_region
          %s1888 = sand.u32 %s473, 1
          %s1889 = scalar_lea.sflag [#allocation3], %s1888
          %s1890 = sand.u32 %s473, 1
          %s1891 = scalar_lea.vmem [#allocation2], %s1890
          %1892 = dma.done %s1889, 16
        $region112: #{bert_wrapper_forward.1} parent=107 // pred_fallthru
          _
      $region108: #{bert_wrapper_forward.1} parent=5 // pred_fallthru
        _
    $region6: #{bert_wrapper_forward.1} parent=1 // loop_footer
      %s33 = sadd.s32 1, %s29
    $region7: #{bert_wrapper_forward.1} parent=1 // loop_footer_branch
      %28 = sbr.rel target = $region3
    $region8: #{bert_wrapper_forward.1} parent=1 // loop_exit
      _
    %1893 = vsyncpa [#allocation3], 1
    %s1894 = scalar_lea.sflag [#allocation3], 1
    %1895 = vsyncpa %s1894, 1

</llo_original>
